<compile_context>
chip_gen: v6e
topology: v6e:2x2x1
jax: 0.10.0
libtpu: 0.0.40
codegen_flags: <defaults>
</compile_context>

<pallas_src>
import functools

import jax
import jax.numpy as jnp
from jax.experimental import pallas as pl
from jax.experimental.pallas import tpu as pltpu


# ----------------------------------------------------------------------------
# Fused Pallas kernel: all GNN layers + pooling + final dense
# ----------------------------------------------------------------------------
def fused_gcn_kernel(w_cat_ref, vec_ref, x0_hbm, a_hbm, pool_hbm, wfin_hbm,
                     o_ref,
                     x_vmem, a_vmem, cat_vmem, pool_vmem, wfin_vmem, dma_sem,
                     *, hidden_size, num_layers, d_pad):
    layer = pl.program_id(0)

    # --- one-time residency: DMA x0 and A into single-copy VMEM scratch -----
    @pl.when(layer == 0)
    def _init():
        cp_x = pltpu.make_async_copy(x0_hbm, x_vmem, dma_sem.at[0])
        cp_a = pltpu.make_async_copy(a_hbm, a_vmem, dma_sem.at[1])
        cp_x.start()
        cp_a.start()
        cp_x.wait()
        cp_a.wait()

    # --- prefetch epilogue-only operands while the layer matmuls run --------
    @pl.when(layer == max(num_layers - 2, 0))
    def _prefetch_epilogue():
        pltpu.make_async_copy(pool_hbm, pool_vmem, dma_sem.at[2]).start()
        pltpu.make_async_copy(wfin_hbm, wfin_vmem, dma_sem.at[3]).start()

    x = x_vmem[...]                                       # (N_pad, D) f32
    x_bf = x.astype(jnp.bfloat16)

    # GraphConv neighbor aggregation: A @ x on the bf16 MXU path
    # (A holds small integer edge counts, exact in bf16 up to 256).
    agg = jnp.dot(a_vmem[...], x_bf, preferred_element_type=jnp.float32)

    w_cat = w_cat_ref[0]                                  # (2D, D) bf16
    vecs = vec_ref[0]                                     # (8, D) f32
    bias = vecs[0:1, :]                                   # b_rel + b_res
    gamma = vecs[1:2, :]
    beta = vecs[2:3, :]

    # Fused projection: [agg | x] @ [[W_rel], [W_root + W_res]] + bias.
    # One 2*D-deep bf16 matmul (256-deep when hidden <= 128), f32 accumulate.
    cat_vmem[:, :d_pad] = agg.astype(jnp.bfloat16)
    cat_vmem[:, d_pad:] = x_bf
    h = jnp.dot(cat_vmem[...], w_cat, preferred_element_type=jnp.float32) + bias

    # LayerNorm over the true hidden width (padded columns of h are exactly
    # zero, zero-padded gamma/beta keep padded output columns at zero).
    # eps = 1e-5, f32 math.
    inv_h = 1.0 / float(hidden_size)
    mean = jnp.sum(h, axis=-1, keepdims=True) * inv_h
    var = jnp.sum(h * h, axis=-1, keepdims=True) * inv_h - mean * mean
    hn = (h - mean) * jax.lax.rsqrt(var + 1e-5) * gamma + beta

    # ReLU (dropout is identity in eval mode); result stays resident in VMEM.
    x_vmem[...] = jnp.maximum(hn, 0.0)

    # Epilogue on the last layer: global mean pool + final bias-free dense.
    @pl.when(layer == num_layers - 1)
    def _finalize():
        pltpu.make_async_copy(pool_hbm, pool_vmem, dma_sem.at[2]).wait()
        pltpu.make_async_copy(wfin_hbm, wfin_vmem, dma_sem.at[3]).wait()
        pooled = jnp.dot(pool_vmem[...], x_vmem[...].astype(jnp.bfloat16),
                         preferred_element_type=jnp.float32)
        o_ref[...] = jnp.dot(pooled.astype(jnp.bfloat16), wfin_vmem[...],
                             preferred_element_type=jnp.float32)


# ----------------------------------------------------------------------------
# Wrapper
# ----------------------------------------------------------------------------
def _round_up(v, m):
    return (v + m - 1) // m * m


def _tpu_vmem_capacity_bytes():
    try:
        info = pltpu.get_tpu_info()
        cap = getattr(info, "vmem_capacity_bytes", None)
        if cap:
            return int(cap)
    except Exception:
        pass
    return 128 * 1024 * 1024          # v5e / v6e physical VMEM


@functools.partial(jax.jit, static_argnames=("num_graphs",))
def graph_conv_network_forward(node_feats, edge_index, batch, params, *,
                               num_graphs):
    """Forward pass of GraphConvNetwork (type == 1, eval mode)."""
    n_nodes, input_size = node_feats.shape
    hidden_size = params["layers"][0]["w_rel"].shape[1]
    output_size = params["w_final"].shape[1]
    num_layers = len(params["layers"])

    # Padded sizes: 128-lane dense feature dims, aligned node/graph dims.
    n_pad = _round_up(n_nodes, 128)
    d_pad = _round_up(max(input_size, hidden_size), 128)
    o_pad = _round_up(output_size, 128)
    g_pad = _round_up(num_graphs, 16)       # 16 = bf16 sublane tile

    # Node features, zero padded (f32 — LayerNorm math stays f32).
    x0 = jnp.zeros((n_pad, d_pad), jnp.float32)
    x0 = x0.at[:n_nodes, :input_size].set(node_feats.astype(jnp.float32))

    # Dense adjacency A[dst, src] += 1 (PyG flow source_to_target), built
    # directly in bf16 (exact for small integer edge counts).
    src, dst = edge_index[0], edge_index[1]
    adj = jnp.zeros((n_pad, n_pad), jnp.bfloat16).at[dst, src].add(1.0)

    # Mean-pool matrix P[g, i] = (batch[i] == g) / count_g, zero padded, bf16.
    onehot = (batch[None, :] == jnp.arange(num_graphs)[:, None]).astype(jnp.float32)
    counts = jnp.maximum(onehot.sum(axis=1, keepdims=True), 1.0)
    pool = jnp.zeros((g_pad, n_pad), jnp.float32)
    pool = pool.at[:num_graphs, :n_nodes].set(onehot / counts)
    pool = pool.astype(jnp.bfloat16)

    # Per-layer weights: fold W_rel and (W_root + W_res) into one stacked
    # (2*D, D) matrix (matmul operand is [agg | x]); bias/gamma/beta packed
    # into one (8, D) f32 slab (rows: 0 = b_rel + b_res, 1 = gamma, 2 = beta).
    w_cat_s, vec_s = [], []
    for lp in params["layers"]:
        f_in = lp["w_rel"].shape[0]
        w_cat = jnp.zeros((2 * d_pad, d_pad), jnp.float32)
        w_cat = w_cat.at[:f_in, :hidden_size].set(lp["w_rel"])
        w_cat = w_cat.at[d_pad:d_pad + f_in, :hidden_size].set(
            lp["w_root"] + lp["w_res"])
        vec = jnp.zeros((8, d_pad), jnp.float32)
        vec = vec.at[0, :hidden_size].set((lp["b_rel"] + lp["b_res"]).reshape(-1))
        vec = vec.at[1, :hidden_size].set(lp["gamma"].reshape(-1))
        vec = vec.at[2, :hidden_size].set(lp["beta"].reshape(-1))
        w_cat_s.append(w_cat.astype(jnp.bfloat16))
        vec_s.append(vec)
    w_cat_s = jnp.stack(w_cat_s)            # (L, 2D, D) bf16
    vec_s = jnp.stack(vec_s)                # (L, 8, D) f32

    w_final = jnp.zeros((d_pad, o_pad), jnp.float32)
    w_final = w_final.at[:hidden_size, :output_size].set(params["w_final"])
    w_final = w_final.astype(jnp.bfloat16)

    # VMEM budget: sum actual buffer counts (single-copy residents + double-
    # buffered streamed weights) plus live intermediates, capped at ~3/4 of
    # the physical VMEM of this TPU generation (64 MiB v7x, 128 MiB v5e/v6e).
    resident = (n_pad * d_pad * 4              # x scratch (single copy, f32)
                + n_pad * n_pad * 2            # A scratch (single copy, bf16)
                + n_pad * 2 * d_pad * 2        # [agg | x] staging (bf16)
                + g_pad * n_pad * 2            # pool scratch (bf16)
                + d_pad * o_pad * 2)           # final weight scratch (bf16)
    pipelined = 2 * (2 * d_pad * d_pad * 2     # W_cat, double-buffered, bf16
                     + 8 * d_pad * 4)          # vec slab, double-buffered, f32
    out_buf = 2 * g_pad * o_pad * 4
    temporaries = 4 * n_pad * d_pad * 4        # agg / h / hn / x live values
    needed = resident + pipelined + out_buf + temporaries
    usable = (_tpu_vmem_capacity_bytes() // 4) * 3
    vmem_limit = int(min(usable, max(needed + (4 << 20), 16 << 20)))

    flops = (num_layers * (2 * n_pad * n_pad * d_pad
                           + 2 * n_pad * (2 * d_pad) * d_pad)
             + 2 * g_pad * n_pad * d_pad + 2 * g_pad * d_pad * o_pad)
    bytes_accessed = (n_pad * n_pad * 2 + n_pad * d_pad * 4
                      + num_layers * (2 * d_pad * d_pad * 2 + 8 * d_pad * 4)
                      + g_pad * n_pad * 2 + d_pad * o_pad * 2
                      + g_pad * o_pad * 4)

    kernel = functools.partial(fused_gcn_kernel,
                               hidden_size=int(hidden_size),
                               num_layers=int(num_layers),
                               d_pad=int(d_pad))

    out_padded = pl.pallas_call(
        kernel,
        out_shape=jax.ShapeDtypeStruct((g_pad, o_pad), jnp.float32),
        grid_spec=pltpu.PrefetchScalarGridSpec(
            num_scalar_prefetch=0,
            grid=(num_layers,),
            in_specs=[
                # Streamed per-layer weights (default double buffering: the
                # next layer's weights prefetch while this layer computes).
                pl.BlockSpec((1, 2 * d_pad, d_pad), lambda l: (l, 0, 0)),
                pl.BlockSpec((1, 8, d_pad), lambda l: (l, 0, 0)),
                # Constant operands stay in HBM and are DMA'd manually exactly
                # once (no auto double-buffering of constant-index blocks).
                pl.BlockSpec(memory_space=pl.ANY),   # x0
                pl.BlockSpec(memory_space=pl.ANY),   # adjacency
                pl.BlockSpec(memory_space=pl.ANY),   # pool matrix
                pl.BlockSpec(memory_space=pl.ANY),   # final weight
            ],
            out_specs=pl.BlockSpec((g_pad, o_pad), lambda l: (0, 0)),
            scratch_shapes=[
                pltpu.VMEM((n_pad, d_pad), jnp.float32),      # resident x
                pltpu.VMEM((n_pad, n_pad), jnp.bfloat16),     # resident A
                pltpu.VMEM((n_pad, 2 * d_pad), jnp.bfloat16),  # [agg | x]
                pltpu.VMEM((g_pad, n_pad), jnp.bfloat16),     # pool (epilogue)
                pltpu.VMEM((d_pad, o_pad), jnp.bfloat16),     # W_final (epi.)
                pltpu.SemaphoreType.DMA((4,)),
            ],
        ),
        compiler_params=pltpu.CompilerParams(
            dimension_semantics=("arbitrary",),       # layers are sequential
            vmem_limit_bytes=vmem_limit,
        ),
        cost_estimate=pl.CostEstimate(
            flops=int(flops),
            transcendentals=int(num_layers * n_pad),
            bytes_accessed=int(bytes_accessed),
        ),
    )(w_cat_s, vec_s, x0, adj, pool, w_final)

    return out_padded[:num_graphs, :output_size]


# ----------------------------------------------------------------------------
# Deterministic parameter init (synthetic — matches __init__ shapes)
# ----------------------------------------------------------------------------
def init_params(key, input_size, hidden_size, output_size, num_layers):
    layers = []
    f_in = input_size
    for _ in range(num_layers):
        key, k1, k2, k3 = jax.random.split(key, 4)
        layers.append(dict(
            w_rel=0.1 * jax.random.normal(k1, (f_in, hidden_size), jnp.float32),
            b_rel=jnp.zeros((1, hidden_size), jnp.float32),
            w_root=0.1 * jax.random.normal(k2, (f_in, hidden_size), jnp.float32),
            w_res=0.1 * jax.random.normal(k3, (f_in, hidden_size), jnp.float32),
            b_res=jnp.zeros((1, hidden_size), jnp.float32),
            gamma=jnp.ones((1, hidden_size), jnp.float32),
            beta=jnp.zeros((1, hidden_size), jnp.float32),
        ))
        f_in = hidden_size
    key, kf = jax.random.split(key)
    w_final = 0.1 * jax.random.normal(kf, (hidden_size, output_size), jnp.float32)
    return dict(layers=layers, w_final=w_final)


# ----------------------------------------------------------------------------
if __name__ == "__main__":
    input_size, hidden_size, output_size = 8, 32, 4
    num_layers = 2
    num_nodes, num_graphs = 16, 2

    key = jax.random.PRNGKey(0)
    key, k_feat = jax.random.split(key)

    # node features (N, input_size)
    node_feats = jax.random.normal(k_feat, (num_nodes, input_size), jnp.float32)

    # two graphs of 8 nodes each; bidirectional ring edges within each graph
    batch = jnp.concatenate([jnp.zeros(8, jnp.int32), jnp.ones(8, jnp.int32)])
    src_list, dst_list = [], []
    for g in range(num_graphs):
        base = g * 8
        for i in range(8):
            a, b = base + i, base + (i + 1) % 8
            src_list += [a, b]
            dst_list += [b, a]
    edge_index = jnp.array([src_list, dst_list], dtype=jnp.int32)  # (2, E)

    params = init_params(key, input_size, hidden_size, output_size, num_layers)

    out = graph_conv_network_forward(node_feats, edge_index, batch, params,
                                     num_graphs=num_graphs)
    out = jax.block_until_ready(out)
    assert out.shape == (num_graphs, output_size)
    print("KERNEL_OK")
</pallas_src>

<mosaic_0001>
module attributes {stable_mosaic.version = 11 : i64} {
  func.func @fused_gcn_kernel(%arg0: i32, %arg1: memref<1x256x128xbf16, #tpu.memory_space<vmem>>, %arg2: memref<1x8x128xf32, #tpu.memory_space<vmem>>, %arg3: memref<128x128xf32, #tpu.memory_space<any>>, %arg4: memref<128x128xbf16, #tpu.memory_space<any>>, %arg5: memref<16x128xbf16, #tpu.memory_space<any>>, %arg6: memref<128x128xbf16, #tpu.memory_space<any>>, %arg7: memref<16x128xf32, #tpu.memory_space<vmem>>, %arg8: memref<128x128xf32, #tpu.memory_space<vmem>>, %arg9: memref<128x128xbf16, #tpu.memory_space<vmem>>, %arg10: memref<128x256xbf16, #tpu.memory_space<vmem>>, %arg11: memref<16x128xbf16, #tpu.memory_space<vmem>>, %arg12: memref<128x128xbf16, #tpu.memory_space<vmem>>, %arg13: memref<4x!tpu.dma_semaphore, #tpu.memory_space<semaphore_mem>>) attributes {dimension_semantics = [#tpu.dimension_semantics<arbitrary>], iteration_bounds = array<i64: 2>, scalar_prefetch = 0 : i64, scratch_operands = 6 : i64, tpu.core_type = #tpu.core_type<tc>, window_params = [{transform_indices = @transform_0, window_bounds = array<i64: 1, 256, 128>}, {transform_indices = @transform_1, window_bounds = array<i64: 1, 8, 128>}, {}, {}, {}, {}, {pipeline_mode = #tpu.pipeline_mode<synchronous>, transform_indices = @transform_6, window_bounds = array<i64: 16, 128>}]} {
    %c0_i32 = arith.constant 0 : i32
    %0 = arith.cmpi eq, %arg0, %c0_i32 : i32
    %1 = arith.extui %0 : i1 to i32
    %c0_i32_0 = arith.constant 0 : i32
    %2 = arith.cmpi ne, %1, %c0_i32_0 : i32
    scf.if %2 {
      %c0_i32_27 = arith.constant 0 : i32
      %52 = tpu.memref_slice %arg13[%c0_i32_27] : memref<4x!tpu.dma_semaphore, #tpu.memory_space<semaphore_mem>> -> memref<1x!tpu.dma_semaphore, #tpu.memory_space<semaphore_mem>>
      %53 = tpu.memref_squeeze %52 : memref<1x!tpu.dma_semaphore, #tpu.memory_space<semaphore_mem>> -> memref<!tpu.dma_semaphore, #tpu.memory_space<semaphore_mem>>
      tpu.enqueue_dma source(%arg3 : memref<128x128xf32, #tpu.memory_space<any>>) target(%arg8 : memref<128x128xf32, #tpu.memory_space<vmem>>) target_semaphore(%53 : memref<!tpu.dma_semaphore, #tpu.memory_space<semaphore_mem>>)
      %c1_i32_28 = arith.constant 1 : i32
      %54 = tpu.memref_slice %arg13[%c1_i32_28] : memref<4x!tpu.dma_semaphore, #tpu.memory_space<semaphore_mem>> -> memref<1x!tpu.dma_semaphore, #tpu.memory_space<semaphore_mem>>
      %55 = tpu.memref_squeeze %54 : memref<1x!tpu.dma_semaphore, #tpu.memory_space<semaphore_mem>> -> memref<!tpu.dma_semaphore, #tpu.memory_space<semaphore_mem>>
      tpu.enqueue_dma source(%arg4 : memref<128x128xbf16, #tpu.memory_space<any>>) target(%arg9 : memref<128x128xbf16, #tpu.memory_space<vmem>>) target_semaphore(%55 : memref<!tpu.dma_semaphore, #tpu.memory_space<semaphore_mem>>)
      %c0_i32_29 = arith.constant 0 : i32
      %56 = tpu.memref_slice %arg13[%c0_i32_29] : memref<4x!tpu.dma_semaphore, #tpu.memory_space<semaphore_mem>> -> memref<1x!tpu.dma_semaphore, #tpu.memory_space<semaphore_mem>>
      %57 = tpu.memref_squeeze %56 : memref<1x!tpu.dma_semaphore, #tpu.memory_space<semaphore_mem>> -> memref<!tpu.dma_semaphore, #tpu.memory_space<semaphore_mem>>
      tpu.wait_dma2 semaphore(%57 : memref<!tpu.dma_semaphore, #tpu.memory_space<semaphore_mem>>) src(%arg3 : memref<128x128xf32, #tpu.memory_space<any>>) dst(%arg8 : memref<128x128xf32, #tpu.memory_space<vmem>>)
      %c1_i32_30 = arith.constant 1 : i32
      %58 = tpu.memref_slice %arg13[%c1_i32_30] : memref<4x!tpu.dma_semaphore, #tpu.memory_space<semaphore_mem>> -> memref<1x!tpu.dma_semaphore, #tpu.memory_space<semaphore_mem>>
      %59 = tpu.memref_squeeze %58 : memref<1x!tpu.dma_semaphore, #tpu.memory_space<semaphore_mem>> -> memref<!tpu.dma_semaphore, #tpu.memory_space<semaphore_mem>>
      tpu.wait_dma2 semaphore(%59 : memref<!tpu.dma_semaphore, #tpu.memory_space<semaphore_mem>>) src(%arg4 : memref<128x128xbf16, #tpu.memory_space<any>>) dst(%arg9 : memref<128x128xbf16, #tpu.memory_space<vmem>>)
    } else {
    }
    %c0_i32_1 = arith.constant 0 : i32
    %3 = arith.cmpi eq, %arg0, %c0_i32_1 : i32
    %4 = arith.extui %3 : i1 to i32
    %c0_i32_2 = arith.constant 0 : i32
    %5 = arith.cmpi ne, %4, %c0_i32_2 : i32
    scf.if %5 {
      %c2_i32 = arith.constant 2 : i32
      %52 = tpu.memref_slice %arg13[%c2_i32] : memref<4x!tpu.dma_semaphore, #tpu.memory_space<semaphore_mem>> -> memref<1x!tpu.dma_semaphore, #tpu.memory_space<semaphore_mem>>
      %53 = tpu.memref_squeeze %52 : memref<1x!tpu.dma_semaphore, #tpu.memory_space<semaphore_mem>> -> memref<!tpu.dma_semaphore, #tpu.memory_space<semaphore_mem>>
      tpu.enqueue_dma source(%arg5 : memref<16x128xbf16, #tpu.memory_space<any>>) target(%arg11 : memref<16x128xbf16, #tpu.memory_space<vmem>>) target_semaphore(%53 : memref<!tpu.dma_semaphore, #tpu.memory_space<semaphore_mem>>)
      %c3_i32 = arith.constant 3 : i32
      %54 = tpu.memref_slice %arg13[%c3_i32] : memref<4x!tpu.dma_semaphore, #tpu.memory_space<semaphore_mem>> -> memref<1x!tpu.dma_semaphore, #tpu.memory_space<semaphore_mem>>
      %55 = tpu.memref_squeeze %54 : memref<1x!tpu.dma_semaphore, #tpu.memory_space<semaphore_mem>> -> memref<!tpu.dma_semaphore, #tpu.memory_space<semaphore_mem>>
      tpu.enqueue_dma source(%arg6 : memref<128x128xbf16, #tpu.memory_space<any>>) target(%arg12 : memref<128x128xbf16, #tpu.memory_space<vmem>>) target_semaphore(%55 : memref<!tpu.dma_semaphore, #tpu.memory_space<semaphore_mem>>)
    } else {
    }
    %c0 = arith.constant 0 : index
    %c0_3 = arith.constant 0 : index
    %6 = vector.load %arg8[%c0, %c0_3] : memref<128x128xf32, #tpu.memory_space<vmem>>, vector<128x128xf32>
    %7 = arith.truncf %6 : vector<128x128xf32> to vector<128x128xbf16>
    %c0_4 = arith.constant 0 : index
    %c0_5 = arith.constant 0 : index
    %8 = vector.load %arg9[%c0_4, %c0_5] : memref<128x128xbf16, #tpu.memory_space<vmem>>, vector<128x128xbf16>
    %cst = arith.constant dense<0.000000e+00> : vector<128x128xf32>
    %9 = tpu.matmul %8, %7, %cst {dimension_numbers = #tpu.dot_dimension_numbers<[1], [0], [0], [1], [0, 0, 1, 1], [], []>} : vector<128x128xbf16>, vector<128x128xbf16>, vector<128x128xf32> -> vector<128x128xf32>
    %c0_6 = arith.constant 0 : index
    %c0_7 = arith.constant 0 : index
    %c0_8 = arith.constant 0 : index
    %10 = vector.load %arg1[%c0_6, %c0_7, %c0_8] : memref<1x256x128xbf16, #tpu.memory_space<vmem>>, vector<1x256x128xbf16>
    %11 = vector.shape_cast %10 : vector<1x256x128xbf16> to vector<256x128xbf16>
    %c0_9 = arith.constant 0 : index
    %c0_10 = arith.constant 0 : index
    %c0_11 = arith.constant 0 : index
    %12 = vector.load %arg2[%c0_9, %c0_10, %c0_11] : memref<1x8x128xf32, #tpu.memory_space<vmem>>, vector<1x8x128xf32>
    %13 = vector.shape_cast %12 : vector<1x8x128xf32> to vector<8x128xf32>
    %14 = vector.extract_strided_slice %13 {offsets = [0, 0], sizes = [1, 128], strides = [1, 1]} : vector<8x128xf32> to vector<1x128xf32>
    %15 = vector.extract_strided_slice %13 {offsets = [1, 0], sizes = [1, 128], strides = [1, 1]} : vector<8x128xf32> to vector<1x128xf32>
    %16 = vector.extract_strided_slice %13 {offsets = [2, 0], sizes = [1, 128], strides = [1, 1]} : vector<8x128xf32> to vector<1x128xf32>
    %17 = arith.truncf %9 : vector<128x128xf32> to vector<128x128xbf16>
    %c0_12 = arith.constant 0 : index
    %c0_13 = arith.constant 0 : index
    %18 = vector.load %arg10[%c0_12, %c0_13] : memref<128x256xbf16, #tpu.memory_space<vmem>>, vector<128x128xbf16>
    tpu.vector_store %arg10[%c0_12, %c0_13], %17 {strides = array<i32>} : memref<128x256xbf16, #tpu.memory_space<vmem>>, vector<128x128xbf16>,
    %c0_14 = arith.constant 0 : index
    %c128 = arith.constant 128 : index
    %19 = vector.load %arg10[%c0_14, %c128] : memref<128x256xbf16, #tpu.memory_space<vmem>>, vector<128x128xbf16>
    tpu.vector_store %arg10[%c0_14, %c128], %7 {strides = array<i32>} : memref<128x256xbf16, #tpu.memory_space<vmem>>, vector<128x128xbf16>,
    %c0_15 = arith.constant 0 : index
    %c0_16 = arith.constant 0 : index
    %20 = vector.load %arg10[%c0_15, %c0_16] : memref<128x256xbf16, #tpu.memory_space<vmem>>, vector<128x256xbf16>
    %cst_17 = arith.constant dense<0.000000e+00> : vector<128x128xf32>
    %21 = tpu.matmul %20, %11, %cst_17 {dimension_numbers = #tpu.dot_dimension_numbers<[1], [0], [0], [1], [0, 0, 1, 1], [], []>} : vector<128x256xbf16>, vector<256x128xbf16>, vector<128x128xf32> -> vector<128x128xf32>
    %22 = vector.broadcast %14 : vector<1x128xf32> to vector<128x128xf32>
    %23 = arith.addf %21, %22 : vector<128x128xf32>
    %cst_18 = arith.constant dense<0.000000e+00> : vector<128xf32>
    %24 = vector.multi_reduction <add>, %23, %cst_18 [1] : vector<128x128xf32> to vector<128xf32>
    %25 = vector.shape_cast %24 : vector<128xf32> to vector<128x1xf32>
    %cst_19 = arith.constant 3.125000e-02 : f32
    %26 = vector.broadcast %cst_19 : f32 to vector<128x1xf32>
    %27 = arith.mulf %25, %26 : vector<128x1xf32>
    %28 = arith.mulf %23, %23 : vector<128x128xf32>
    %cst_20 = arith.constant dense<0.000000e+00> : vector<128xf32>
    %29 = vector.multi_reduction <add>, %28, %cst_20 [1] : vector<128x128xf32> to vector<128xf32>
    %30 = vector.shape_cast %29 : vector<128xf32> to vector<128x1xf32>
    %cst_21 = arith.constant 3.125000e-02 : f32
    %31 = vector.broadcast %cst_21 : f32 to vector<128x1xf32>
    %32 = arith.mulf %30, %31 : vector<128x1xf32>
    %33 = arith.mulf %27, %27 : vector<128x1xf32>
    %34 = arith.subf %32, %33 : vector<128x1xf32>
    %35 = vector.broadcast %27 : vector<128x1xf32> to vector<128x128xf32>
    %36 = arith.subf %23, %35 : vector<128x128xf32>
    %cst_22 = arith.constant 9.99999974E-6 : f32
    %37 = vector.broadcast %cst_22 : f32 to vector<128x1xf32>
    %38 = arith.addf %34, %37 : vector<128x1xf32>
    %39 = math.rsqrt %38 : vector<128x1xf32>
    %40 = vector.broadcast %39 : vector<128x1xf32> to vector<128x128xf32>
    %41 = arith.mulf %36, %40 : vector<128x128xf32>
    %42 = vector.broadcast %15 : vector<1x128xf32> to vector<128x128xf32>
    %43 = arith.mulf %41, %42 : vector<128x128xf32>
    %44 = vector.broadcast %16 : vector<1x128xf32> to vector<128x128xf32>
    %45 = arith.addf %43, %44 : vector<128x128xf32>
    %cst_23 = arith.constant 0.000000e+00 : f32
    %46 = vector.broadcast %cst_23 : f32 to vector<128x128xf32>
    %47 = arith.maximumf %45, %46 : vector<128x128xf32>
    %c0_24 = arith.constant 0 : index
    %c0_25 = arith.constant 0 : index
    %48 = vector.load %arg8[%c0_24, %c0_25] : memref<128x128xf32, #tpu.memory_space<vmem>>, vector<128x128xf32>
    tpu.vector_store %arg8[%c0_24, %c0_25], %47 {strides = array<i32>} : memref<128x128xf32, #tpu.memory_space<vmem>>, vector<128x128xf32>,
    %c1_i32 = arith.constant 1 : i32
    %49 = arith.cmpi eq, %arg0, %c1_i32 : i32
    %50 = arith.extui %49 : i1 to i32
    %c0_i32_26 = arith.constant 0 : i32
    %51 = arith.cmpi ne, %50, %c0_i32_26 : i32
    scf.if %51 {
      %c2_i32 = arith.constant 2 : i32
      %52 = tpu.memref_slice %arg13[%c2_i32] : memref<4x!tpu.dma_semaphore, #tpu.memory_space<semaphore_mem>> -> memref<1x!tpu.dma_semaphore, #tpu.memory_space<semaphore_mem>>
      %53 = tpu.memref_squeeze %52 : memref<1x!tpu.dma_semaphore, #tpu.memory_space<semaphore_mem>> -> memref<!tpu.dma_semaphore, #tpu.memory_space<semaphore_mem>>
      tpu.wait_dma2 semaphore(%53 : memref<!tpu.dma_semaphore, #tpu.memory_space<semaphore_mem>>) src(%arg5 : memref<16x128xbf16, #tpu.memory_space<any>>) dst(%arg11 : memref<16x128xbf16, #tpu.memory_space<vmem>>)
      %c3_i32 = arith.constant 3 : i32
      %54 = tpu.memref_slice %arg13[%c3_i32] : memref<4x!tpu.dma_semaphore, #tpu.memory_space<semaphore_mem>> -> memref<1x!tpu.dma_semaphore, #tpu.memory_space<semaphore_mem>>
      %55 = tpu.memref_squeeze %54 : memref<1x!tpu.dma_semaphore, #tpu.memory_space<semaphore_mem>> -> memref<!tpu.dma_semaphore, #tpu.memory_space<semaphore_mem>>
      tpu.wait_dma2 semaphore(%55 : memref<!tpu.dma_semaphore, #tpu.memory_space<semaphore_mem>>) src(%arg6 : memref<128x128xbf16, #tpu.memory_space<any>>) dst(%arg12 : memref<128x128xbf16, #tpu.memory_space<vmem>>)
      %c0_27 = arith.constant 0 : index
      %c0_28 = arith.constant 0 : index
      %56 = vector.load %arg11[%c0_27, %c0_28] : memref<16x128xbf16, #tpu.memory_space<vmem>>, vector<16x128xbf16>
      %c0_29 = arith.constant 0 : index
      %c0_30 = arith.constant 0 : index
      %57 = vector.load %arg8[%c0_29, %c0_30] : memref<128x128xf32, #tpu.memory_space<vmem>>, vector<128x128xf32>
      %58 = arith.truncf %57 : vector<128x128xf32> to vector<128x128xbf16>
      %cst_31 = arith.constant dense<0.000000e+00> : vector<16x128xf32>
      %59 = tpu.matmul %56, %58, %cst_31 {dimension_numbers = #tpu.dot_dimension_numbers<[1], [0], [0], [1], [0, 0, 1, 1], [], []>} : vector<16x128xbf16>, vector<128x128xbf16>, vector<16x128xf32> -> vector<16x128xf32>
      %60 = arith.truncf %59 : vector<16x128xf32> to vector<16x128xbf16>
      %c0_32 = arith.constant 0 : index
      %c0_33 = arith.constant 0 : index
      %61 = vector.load %arg12[%c0_32, %c0_33] : memref<128x128xbf16, #tpu.memory_space<vmem>>, vector<128x128xbf16>
      %cst_34 = arith.constant dense<0.000000e+00> : vector<16x128xf32>
      %62 = tpu.matmul %60, %61, %cst_34 {dimension_numbers = #tpu.dot_dimension_numbers<[1], [0], [0], [1], [0, 0, 1, 1], [], []>} : vector<16x128xbf16>, vector<128x128xbf16>, vector<16x128xf32> -> vector<16x128xf32>
      %c0_35 = arith.constant 0 : index
      %c0_36 = arith.constant 0 : index
      %63 = vector.load %arg7[%c0_35, %c0_36] : memref<16x128xf32, #tpu.memory_space<vmem>>, vector<16x128xf32>
      tpu.vector_store %arg7[%c0_35, %c0_36], %62 {strides = array<i32>} : memref<16x128xf32, #tpu.memory_space<vmem>>, vector<16x128xf32>,
    } else {
    }
    return
  }
  func.func @transform_0(%arg0: i32) -> (i32, i32, i32) {
    %c0_i32 = arith.constant 0 : i32
    %c0_i32_0 = arith.constant 0 : i32
    %c0_i32_1 = arith.constant 0 : i32
    return %arg0, %c0_i32, %c0_i32_0 : i32, i32, i32
  }
  func.func @transform_1(%arg0: i32) -> (i32, i32, i32) {
    %c0_i32 = arith.constant 0 : i32
    %c0_i32_0 = arith.constant 0 : i32
    %c0_i32_1 = arith.constant 0 : i32
    return %arg0, %c0_i32, %c0_i32_0 : i32, i32, i32
  }
  func.func @transform_6(%arg0: i32) -> (i32, i32) {
    %c0_i32 = arith.constant 0 : i32
    %c0_i32_0 = arith.constant 0 : i32
    %c0_i32_1 = arith.constant 0 : i32
    return %c0_i32, %c0_i32_0 : i32, i32
  }
}

</mosaic_0001>

<llo_original>
// kernel: graph_conv_network_forward.1
$region0: #{graph_conv_network_forward.1}
  #allocation0 [shape = 'u32[]', space=smem, size = 0x4, offset = 0x4, fixed_abs, tag = 'smem constant byte address 0x4 - core index']
  #allocation1 [shape = 'u32[144,128]{1,0:T(1,128)}', space=vmem, size = 0x12000, scoped, tag = 'internal scratch']
  #allocation2 [shape = 'f32[128,128]{1,0:T(8,128)}', space=vmem, size = 0x10000, scoped, tag = 'scratch operand']
  #allocation3 [shape = 'bf16[128,128]{1,0:T(8,128)(2,1)}', space=vmem, size = 0x8000, scoped, tag = 'scratch operand']
  #allocation4 [shape = 'bf16[128,256]{1,0:T(8,128)(2,1)}', space=vmem, size = 0x10000, scoped, tag = 'scratch operand']
  #allocation5 [shape = 'bf16[16,128]{1,0:T(8,128)(2,1)}', space=vmem, size = 0x1000, scoped, tag = 'scratch operand']
  #allocation6 [shape = 'bf16[128,128]{1,0:T(8,128)(2,1)}', space=vmem, size = 0x8000, scoped, tag = 'scratch operand']
  #allocation7 [shape = 's32[4]{0}', space=sflag, size = 0x10, scoped, tag = 'scratch operand']
  #allocation8 [shape = 's32[]', space=sflag, size = 0x4, offset = 0, fixed_abs, tag = 'sflag constant byte address 0x0 - dummy sync flag']
  #allocation9 [shape = 's32[]', space=sflag, size = 0x4, offset = 0, fixed_abs, tag = 'sflag constant byte address 0x0 - dummy sync flag']
  #allocation10 [shape = 's32[]', space=sflag, size = 0x4, offset = 0, fixed_abs, tag = 'sflag constant byte address 0x0 - dummy sync flag']
  #allocation11 [shape = 's32[]', space=sflag, size = 0x4, offset = 0, fixed_abs, tag = 'sflag constant byte address 0x0 - dummy sync flag']
  %s0 = inlined_call_operand.vmem [shape: bf16[2,256,128], index: 0, kind: input, shape index: {}]
  %s1 = inlined_call_operand.vmem [shape: f32[2,8,128], index: 1, kind: input, shape index: {}]
  %s2 = inlined_call_operand.vmem [shape: f32[128,128], index: 2, kind: input, shape index: {}]
  %s3 = inlined_call_operand.vmem [shape: bf16[128,128], index: 3, kind: input, shape index: {}]
  %s4 = inlined_call_operand.vmem [shape: bf16[16,128], index: 4, kind: input, shape index: {}]
  %s5 = inlined_call_operand.vmem [shape: bf16[128,128], index: 5, kind: input, shape index: {}]
  %s6 = inlined_call_operand.vmem [shape: f32[16,128], index: 6, kind: output, shape index: {}]
  %s7 = sld [smem:[#allocation0]]
  $region185: #{graph_conv_network_forward.1} parent=0
    _
  %s9 = ssub.s32 1, %s7
  %s10 = scalar_select 0, %s9, %s7
  loop: start=0, step=1, limit=4
  $region2: #{graph_conv_network_forward.1} parent=0 // loop_pre_header
    _
  $region3: #{graph_conv_network_forward.1} parent=0 // loop_header
    %s12 = sphi 0, %s16
    %p13 = scmp.ge.s32.totalorder %s12, 4
    %s22 = sphi 0, %s24
    %s25 = sphi 0, %s22
    %s26 = sphi 0, %s25
    %s42 = sphi 0, %s26
    %s48 = sphi 0, %s50
    %s51 = sphi 0, %s48
    %s52 = sphi 0, %s51
    %s68 = sphi 0, %s52
    %s72 = sphi 0, %s72
    %s74 = sphi 0, %s72
    %s75 = sphi 0, %s74
    %s89 = sphi 0, %s75
  $region4: #{graph_conv_network_forward.1} parent=0 // loop_header_branch
    %15 = sbr.rel (%p13) target = $region8
  $region5: #{graph_conv_network_forward.1} parent=0 // loop_body
    %s17 = ssub.s32 %s12, 1
    %s18 = ssub.s32 %s12, 2
    %s19 = sadd.s32 %s12, 1
    %s20 = ssub.s32 %s12, %s19
    %p21 = scmp.eq.s32.totalorder %s20, 0
    %s23 = sadd.s32 %s22, 1
    %s24 = scalar_select %p21, %s22, %s23
    %p27 = pneg %p21
    %p28 = scmp.eq.s32.totalorder %s12, 1
    %p29 = por %p27, %p28
    %p30 = scmp.ne.s32.totalorder %s22, %s25
    %p31 = scmp.eq.s32.totalorder %s12, 0
    %p32 = por %p30, %p31
    %p33 = scmp.ne.s32.totalorder %s22, %s25
    %p34 = scmp.eq.s32.totalorder %s17, 1
    %p35 = por %p33, %p34
    %p36 = scmp.ne.s32.totalorder %s25, %s26
    %p37 = scmp.eq.s32.totalorder %s17, 0
    %p38 = por %p36, %p37
    %p39 = scmp.ne.s32.totalorder %s25, %s26
    %p40 = scmp.eq.s32.totalorder %s18, 1
    %p41 = por %p39, %p40
    %p43 = scmp.ne.s32.totalorder %s26, %s42
    %p44 = scmp.eq.s32.totalorder %s18, 0
    %p45 = por %p43, %p44
    %s46 = ssub.s32 %s12, %s19
    %p47 = scmp.eq.s32.totalorder %s46, 0
    %s49 = sadd.s32 %s48, 1
    %s50 = scalar_select %p47, %s48, %s49
    %p53 = pneg %p47
    %p54 = scmp.eq.s32.totalorder %s12, 1
    %p55 = por %p53, %p54
    %p56 = scmp.ne.s32.totalorder %s48, %s51
    %p57 = scmp.eq.s32.totalorder %s12, 0
    %p58 = por %p56, %p57
    %p59 = scmp.ne.s32.totalorder %s48, %s51
    %p60 = scmp.eq.s32.totalorder %s17, 1
    %p61 = por %p59, %p60
    %p62 = scmp.ne.s32.totalorder %s51, %s52
    %p63 = scmp.eq.s32.totalorder %s17, 0
    %p64 = por %p62, %p63
    %p65 = scmp.ne.s32.totalorder %s51, %s52
    %p66 = scmp.eq.s32.totalorder %s18, 1
    %p67 = por %p65, %p66
    %p69 = scmp.ne.s32.totalorder %s52, %s68
    %p70 = scmp.eq.s32.totalorder %s18, 0
    %p71 = por %p69, %p70
    %s73 = sadd.s32 %s72, 1
    %p76 = scmp.eq.s32.totalorder %s12, 1
    %p77 = scmp.ne.s32.totalorder %s72, %s74
    %p78 = scmp.eq.s32.totalorder %s12, 0
    %p79 = por %p77, %p78
    %p80 = scmp.ne.s32.totalorder %s72, %s74
    %p81 = scmp.eq.s32.totalorder %s17, 1
    %p82 = por %p80, %p81
    %p83 = scmp.ne.s32.totalorder %s74, %s75
    %p84 = scmp.eq.s32.totalorder %s17, 0
    %p85 = por %p83, %p84
    %p86 = scmp.ne.s32.totalorder %s74, %s75
    %p87 = scmp.eq.s32.totalorder %s18, 1
    %p88 = por %p86, %p87
    %p90 = scmp.ne.s32.totalorder %s75, %s89
    %p91 = scmp.eq.s32.totalorder %s18, 0
    %p92 = por %p90, %p91
    %p93 = scmp.le.s32.totalorder 1, %s12
    %p94 = scmp.lt.s32.totalorder %s12, 3
    %p95 = pnand %p93, %p94
    %p96 = pneg %p95
    // Predicated region
    $region9: #{graph_conv_network_forward.1} parent=5 // pred_check
      _
    $region10: #{graph_conv_network_forward.1} parent=5 // pred_check_branch
      %98 = sbr.rel (%p95) target = $region12
    $region11: #{graph_conv_network_forward.1} parent=5 // pred_region
      %s99 = ssub.s32 %s12, 1
    $region12: #{graph_conv_network_forward.1} parent=5 // pred_fallthru
      _
    %p100 = scmp.lt.s32.totalorder %s12, 2
    // Predicated region
    $region13: #{graph_conv_network_forward.1} parent=5 // pred_check
      %p101 = pneg %p100
    $region14: #{graph_conv_network_forward.1} parent=5 // pred_check_branch
      %103 = sbr.rel (%p101) target = $region16
    $region15: #{graph_conv_network_forward.1} parent=5 // pred_region
      // Predicated region
      $region17: #{graph_conv_network_forward.1} parent=15 // pred_check
        %p104 = pneg %p32
      $region18: #{graph_conv_network_forward.1} parent=15 // pred_check_branch
        %106 = sbr.rel (%p104) target = $region20
      $region19: #{graph_conv_network_forward.1} parent=15 // pred_region
        %p107 = scmp.lt.s32.totalorder %s12, 1
        %s108 = scalar_select %p107, %s12, 1
        %s109 = smul.addr %s108, 32
        %s110 = smul.addr %s109, 4
        %s111 = scalar_lea.vmem %s0, %s110
      $region20: #{graph_conv_network_forward.1} parent=15 // pred_fallthru
        _
      // Predicated region
      $region21: #{graph_conv_network_forward.1} parent=15 // pred_check
        %p112 = pneg %p58
      $region22: #{graph_conv_network_forward.1} parent=15 // pred_check_branch
        %114 = sbr.rel (%p112) target = $region24
      $region23: #{graph_conv_network_forward.1} parent=15 // pred_region
        %p115 = scmp.lt.s32.totalorder %s12, 1
        %s116 = scalar_select %p115, %s12, 1
        %s117 = smul.addr %s116, 8
        %s118 = scalar_lea.vmem %s1, %s117
      $region24: #{graph_conv_network_forward.1} parent=15 // pred_fallthru
        _
    $region16: #{graph_conv_network_forward.1} parent=5 // pred_fallthru
      _
    %p119 = scmp.le.s32.totalorder 1, %s12
    %p120 = scmp.lt.s32.totalorder %s12, 3
    %p121 = pnand %p119, %p120
    %p122 = pneg %p121
    // Predicated region
    $region25: #{graph_conv_network_forward.1} parent=5 // pred_check
      _
    $region26: #{graph_conv_network_forward.1} parent=5 // pred_check_branch
      %124 = sbr.rel (%p121) target = $region28
    $region27: #{graph_conv_network_forward.1} parent=5 // pred_region
      %s125 = ssub.s32 %s12, 1
      %p126 = scmp.lt.s32.totalorder %s17, 1
      %s127 = scalar_select %p126, %s17, 1
      %s128 = smul.addr %s127, 32
      %s129 = smul.addr %s128, 4
      %s130 = scalar_lea.vmem %s0, %s129
      %p131 = pneg %p38
      %p132 = pneg %p35
      %p133 = scmp.lt.s32.totalorder %s17, 1
      %s134 = scalar_select %p133, %s17, 1
      %s135 = smul.addr %s134, 8
      %s136 = scalar_lea.vmem %s1, %s135
      %p137 = pneg %p64
      %p138 = pneg %p61
      %p139 = pneg %p85
      %p140 = pneg %p82
      %p141 = scmp.lt.s32.totalorder %s17, 1
      %s142 = scalar_select %p141, %s17, 1
      %s143 = smul.addr %s142, 32
      %s144 = smul.addr %s143, 4
      %s145 = scalar_lea.vmem %s0, %s144
      %p146 = scmp.lt.s32.totalorder %s17, 1
      %s147 = scalar_select %p146, %s17, 1
      %s148 = smul.addr %s147, 8
      %s149 = scalar_lea.vmem %s1, %s148
      %p151 = scmp.eq.s32.totalorder %s17, 0
      // Predicated region
      $region29: #{graph_conv_network_forward.1} parent=27 // pred_check
        %p152 = pneg %p151
      $region30: #{graph_conv_network_forward.1} parent=27 // pred_check_branch
        %154 = sbr.rel (%p152) target = $region32
      $region31: #{graph_conv_network_forward.1} parent=27 // pred_region
        %p156 = scmp.lt.u32.totalorder 128, 8
        %p157 = pneg %p156
        // Predicated region
        $region33: #{graph_conv_network_forward.1} parent=31 // pred_check
          _
        $region34: #{graph_conv_network_forward.1} parent=31 // pred_check_branch
          %159 = sbr.rel (%p156) target = $region36
        $region35: #{graph_conv_network_forward.1} parent=31 // pred_region
          %s175 = sand.u32 128, 7
          %p176 = scmp.eq.s32.totalorder %s175, 0
          // Predicated region
          $region48: #{graph_conv_network_forward.1} parent=35 // pred_check
            %p177 = pneg %p176
          $region49: #{graph_conv_network_forward.1} parent=35 // pred_check_branch
            %179 = sbr.rel (%p177) target = $region51
          $region50: #{graph_conv_network_forward.1} parent=35 // pred_region
            loop: start=0, step=1, limit=1
            $region52: #{graph_conv_network_forward.1} parent=50 // loop_pre_header
              _
            $region53: #{graph_conv_network_forward.1} parent=50 // loop_header
              %s181 = sphi 0, %s185
              %p182 = scmp.ge.s32.totalorder %s181, 1
              %s186 = sphi %s2, %s2
              %s187 = sphi [#allocation2], [#allocation2]
            $region54: #{graph_conv_network_forward.1} parent=50 // loop_header_branch
              %184 = sbr.rel (%p182) target = $region58
            $region55: #{graph_conv_network_forward.1} parent=50 // loop_body
              %v188 = vld [vmem:[%s186] sm:$0xff]
              %189 = vst [vmem:[%s187] sm:$0xff] %v188
              %v190 = vld [vmem:[%s186 + $0x8] sm:$0xff]
              %191 = vst [vmem:[%s187 + $0x8] sm:$0xff] %v190
              %v192 = vld [vmem:[%s186 + $0x10] sm:$0xff]
              %193 = vst [vmem:[%s187 + $0x10] sm:$0xff] %v192
              %v194 = vld [vmem:[%s186 + $0x18] sm:$0xff]
              %195 = vst [vmem:[%s187 + $0x18] sm:$0xff] %v194
              %v196 = vld [vmem:[%s186 + $0x20] sm:$0xff]
              %197 = vst [vmem:[%s187 + $0x20] sm:$0xff] %v196
              %v198 = vld [vmem:[%s186 + $0x28] sm:$0xff]
              %199 = vst [vmem:[%s187 + $0x28] sm:$0xff] %v198
              %v200 = vld [vmem:[%s186 + $0x30] sm:$0xff]
              %201 = vst [vmem:[%s187 + $0x30] sm:$0xff] %v200
              %v202 = vld [vmem:[%s186 + $0x38] sm:$0xff]
              %203 = vst [vmem:[%s187 + $0x38] sm:$0xff] %v202
              %v204 = vld [vmem:[%s186 + $0x40] sm:$0xff]
              %205 = vst [vmem:[%s187 + $0x40] sm:$0xff] %v204
              %v206 = vld [vmem:[%s186 + $0x48] sm:$0xff]
              %207 = vst [vmem:[%s187 + $0x48] sm:$0xff] %v206
              %v208 = vld [vmem:[%s186 + $0x50] sm:$0xff]
              %209 = vst [vmem:[%s187 + $0x50] sm:$0xff] %v208
              %v210 = vld [vmem:[%s186 + $0x58] sm:$0xff]
              %211 = vst [vmem:[%s187 + $0x58] sm:$0xff] %v210
              %v212 = vld [vmem:[%s186 + $0x60] sm:$0xff]
              %213 = vst [vmem:[%s187 + $0x60] sm:$0xff] %v212
              %v214 = vld [vmem:[%s186 + $0x68] sm:$0xff]
              %215 = vst [vmem:[%s187 + $0x68] sm:$0xff] %v214
              %v216 = vld [vmem:[%s186 + $0x70] sm:$0xff]
              %217 = vst [vmem:[%s187 + $0x70] sm:$0xff] %v216
              %v218 = vld [vmem:[%s186 + $0x78] sm:$0xff]
              %219 = vst [vmem:[%s187 + $0x78] sm:$0xff] %v218
            $region56: #{graph_conv_network_forward.1} parent=50 // loop_footer
              %s185 = sadd.s32 1, %s181
            $region57: #{graph_conv_network_forward.1} parent=50 // loop_footer_branch
              %180 = sbr.rel target = $region53
            $region58: #{graph_conv_network_forward.1} parent=50 // loop_exit
              _
          $region51: #{graph_conv_network_forward.1} parent=35 // pred_fallthru
            _
          %p220 = pneg %p176
          // Predicated region
          $region59: #{graph_conv_network_forward.1} parent=35 // pred_check
            _
          $region60: #{graph_conv_network_forward.1} parent=35 // pred_check_branch
            %222 = sbr.rel (%p176) target = $region62
          $region61: #{graph_conv_network_forward.1} parent=35 // pred_region
            %s223 = sand.u32 128, 7
          $region62: #{graph_conv_network_forward.1} parent=35 // pred_fallthru
            _
        $region36: #{graph_conv_network_forward.1} parent=31 // pred_fallthru
          _
        // Predicated region
        $region37: #{graph_conv_network_forward.1} parent=31 // pred_check
          %p160 = pneg %p156
        $region38: #{graph_conv_network_forward.1} parent=31 // pred_check_branch
          %162 = sbr.rel (%p160) target = $region40
        $region39: #{graph_conv_network_forward.1} parent=31 // pred_region
          %s163 = sshll.u32 1, 128
          %s164 = ssub.s32 %s163, 1
          loop: start=0, step=1, limit=1
          $region41: #{graph_conv_network_forward.1} parent=39 // loop_pre_header
            _
          $region42: #{graph_conv_network_forward.1} parent=39 // loop_header
            %s166 = sphi 0, %s170
            %p167 = scmp.ge.s32.totalorder %s166, 1
            %s171 = sphi %s2, %s2
            %s172 = sphi [#allocation2], [#allocation2]
          $region43: #{graph_conv_network_forward.1} parent=39 // loop_header_branch
            %169 = sbr.rel (%p167) target = $region47
          $region44: #{graph_conv_network_forward.1} parent=39 // loop_body
            %v173 = vld [vmem:[%s171] sm:%s164]
            %174 = vst [vmem:[%s172] sm:%s164] %v173
          $region45: #{graph_conv_network_forward.1} parent=39 // loop_footer
            %s170 = sadd.s32 1, %s166
          $region46: #{graph_conv_network_forward.1} parent=39 // loop_footer_branch
            %165 = sbr.rel target = $region42
          $region47: #{graph_conv_network_forward.1} parent=39 // loop_exit
            _
        $region40: #{graph_conv_network_forward.1} parent=31 // pred_fallthru
          _
        // Predicated region
        $region63: #{graph_conv_network_forward.1} parent=31 // pred_check
          _
        $region64: #{graph_conv_network_forward.1} parent=31 // pred_check_branch
          %226 = sbr.rel (0) target = $region66
        $region65: #{graph_conv_network_forward.1} parent=31 // pred_region
          %227 = vsyncadd [#allocation7], 2048
        $region66: #{graph_conv_network_forward.1} parent=31 // pred_fallthru
          _
        %s228 = scalar_lea.sflag [#allocation7], 1
        %p230 = scmp.lt.u32.totalorder 64, 8
        %p231 = pneg %p230
        // Predicated region
        $region67: #{graph_conv_network_forward.1} parent=31 // pred_check
          _
        $region68: #{graph_conv_network_forward.1} parent=31 // pred_check_branch
          %233 = sbr.rel (%p230) target = $region70
        $region69: #{graph_conv_network_forward.1} parent=31 // pred_region
          %s249 = sand.u32 64, 7
          %p250 = scmp.eq.s32.totalorder %s249, 0
          // Predicated region
          $region82: #{graph_conv_network_forward.1} parent=69 // pred_check
            %p251 = pneg %p250
          $region83: #{graph_conv_network_forward.1} parent=69 // pred_check_branch
            %253 = sbr.rel (%p251) target = $region85
          $region84: #{graph_conv_network_forward.1} parent=69 // pred_region
            loop: start=0, step=1, limit=1
            $region86: #{graph_conv_network_forward.1} parent=84 // loop_pre_header
              _
            $region87: #{graph_conv_network_forward.1} parent=84 // loop_header
              %s255 = sphi 0, %s259
              %p256 = scmp.ge.s32.totalorder %s255, 1
              %s260 = sphi %s3, %s3
              %s261 = sphi [#allocation3], [#allocation3]
            $region88: #{graph_conv_network_forward.1} parent=84 // loop_header_branch
              %258 = sbr.rel (%p256) target = $region92
            $region89: #{graph_conv_network_forward.1} parent=84 // loop_body
              %v262 = vld [vmem:[%s260] sm:$0xff]
              %263 = vst [vmem:[%s261] sm:$0xff] %v262
              %v264 = vld [vmem:[%s260 + $0x8] sm:$0xff]
              %265 = vst [vmem:[%s261 + $0x8] sm:$0xff] %v264
              %v266 = vld [vmem:[%s260 + $0x10] sm:$0xff]
              %267 = vst [vmem:[%s261 + $0x10] sm:$0xff] %v266
              %v268 = vld [vmem:[%s260 + $0x18] sm:$0xff]
              %269 = vst [vmem:[%s261 + $0x18] sm:$0xff] %v268
              %v270 = vld [vmem:[%s260 + $0x20] sm:$0xff]
              %271 = vst [vmem:[%s261 + $0x20] sm:$0xff] %v270
              %v272 = vld [vmem:[%s260 + $0x28] sm:$0xff]
              %273 = vst [vmem:[%s261 + $0x28] sm:$0xff] %v272
              %v274 = vld [vmem:[%s260 + $0x30] sm:$0xff]
              %275 = vst [vmem:[%s261 + $0x30] sm:$0xff] %v274
              %v276 = vld [vmem:[%s260 + $0x38] sm:$0xff]
              %277 = vst [vmem:[%s261 + $0x38] sm:$0xff] %v276
            $region90: #{graph_conv_network_forward.1} parent=84 // loop_footer
              %s259 = sadd.s32 1, %s255
            $region91: #{graph_conv_network_forward.1} parent=84 // loop_footer_branch
              %254 = sbr.rel target = $region87
            $region92: #{graph_conv_network_forward.1} parent=84 // loop_exit
              _
          $region85: #{graph_conv_network_forward.1} parent=69 // pred_fallthru
            _
          %p278 = pneg %p250
          // Predicated region
          $region93: #{graph_conv_network_forward.1} parent=69 // pred_check
            _
          $region94: #{graph_conv_network_forward.1} parent=69 // pred_check_branch
            %280 = sbr.rel (%p250) target = $region96
          $region95: #{graph_conv_network_forward.1} parent=69 // pred_region
            %s281 = sand.u32 64, 7
          $region96: #{graph_conv_network_forward.1} parent=69 // pred_fallthru
            _
        $region70: #{graph_conv_network_forward.1} parent=31 // pred_fallthru
          _
        // Predicated region
        $region71: #{graph_conv_network_forward.1} parent=31 // pred_check
          %p234 = pneg %p230
        $region72: #{graph_conv_network_forward.1} parent=31 // pred_check_branch
          %236 = sbr.rel (%p234) target = $region74
        $region73: #{graph_conv_network_forward.1} parent=31 // pred_region
          %s237 = sshll.u32 1, 64
          %s238 = ssub.s32 %s237, 1
          loop: start=0, step=1, limit=1
          $region75: #{graph_conv_network_forward.1} parent=73 // loop_pre_header
            _
          $region76: #{graph_conv_network_forward.1} parent=73 // loop_header
            %s240 = sphi 0, %s244
            %p241 = scmp.ge.s32.totalorder %s240, 1
            %s245 = sphi %s3, %s3
            %s246 = sphi [#allocation3], [#allocation3]
          $region77: #{graph_conv_network_forward.1} parent=73 // loop_header_branch
            %243 = sbr.rel (%p241) target = $region81
          $region78: #{graph_conv_network_forward.1} parent=73 // loop_body
            %v247 = vld [vmem:[%s245] sm:%s238]
            %248 = vst [vmem:[%s246] sm:%s238] %v247
          $region79: #{graph_conv_network_forward.1} parent=73 // loop_footer
            %s244 = sadd.s32 1, %s240
          $region80: #{graph_conv_network_forward.1} parent=73 // loop_footer_branch
            %239 = sbr.rel target = $region76
          $region81: #{graph_conv_network_forward.1} parent=73 // loop_exit
            _
        $region74: #{graph_conv_network_forward.1} parent=31 // pred_fallthru
          _
        // Predicated region
        $region97: #{graph_conv_network_forward.1} parent=31 // pred_check
          _
        $region98: #{graph_conv_network_forward.1} parent=31 // pred_check_branch
          %284 = sbr.rel (0) target = $region100
        $region99: #{graph_conv_network_forward.1} parent=31 // pred_region
          %285 = vsyncadd %s228, 1024
        $region100: #{graph_conv_network_forward.1} parent=31 // pred_fallthru
          _
        %s286 = smul.u32 128, 1
        %s287 = sshll.u32 %s286, 4
        %288 = dma.done [#allocation7], %s287
        %s289 = smul.u32 4, 16
        %s290 = smul.u32 %s289, 1
        %s291 = sshll.u32 %s290, 4
        %292 = dma.done %s228, %s291
        %s293 = scalar_lea.sflag [#allocation7], 2
        %p295 = scmp.lt.u32.totalorder 8, 8
        %p296 = pneg %p295
        // Predicated region
        $region101: #{graph_conv_network_forward.1} parent=31 // pred_check
          _
        $region102: #{graph_conv_network_forward.1} parent=31 // pred_check_branch
          %298 = sbr.rel (%p295) target = $region104
        $region103: #{graph_conv_network_forward.1} parent=31 // pred_region
          %s314 = sand.u32 8, 7
          %p315 = scmp.eq.s32.totalorder %s314, 0
          // Predicated region
          $region116: #{graph_conv_network_forward.1} parent=103 // pred_check
            %p316 = pneg %p315
          $region117: #{graph_conv_network_forward.1} parent=103 // pred_check_branch
            %318 = sbr.rel (%p316) target = $region119
          $region118: #{graph_conv_network_forward.1} parent=103 // pred_region
            loop: start=0, step=1, limit=1
            $region120: #{graph_conv_network_forward.1} parent=118 // loop_pre_header
              _
            $region121: #{graph_conv_network_forward.1} parent=118 // loop_header
              %s320 = sphi 0, %s324
              %p321 = scmp.ge.s32.totalorder %s320, 1
              %s325 = sphi %s4, %s4
              %s326 = sphi [#allocation5], [#allocation5]
            $region122: #{graph_conv_network_forward.1} parent=118 // loop_header_branch
              %323 = sbr.rel (%p321) target = $region126
            $region123: #{graph_conv_network_forward.1} parent=118 // loop_body
              %v327 = vld [vmem:[%s325] sm:$0xff]
              %328 = vst [vmem:[%s326] sm:$0xff] %v327
            $region124: #{graph_conv_network_forward.1} parent=118 // loop_footer
              %s324 = sadd.s32 1, %s320
            $region125: #{graph_conv_network_forward.1} parent=118 // loop_footer_branch
              %319 = sbr.rel target = $region121
            $region126: #{graph_conv_network_forward.1} parent=118 // loop_exit
              _
          $region119: #{graph_conv_network_forward.1} parent=103 // pred_fallthru
            _
          %p329 = pneg %p315
          // Predicated region
          $region127: #{graph_conv_network_forward.1} parent=103 // pred_check
            _
          $region128: #{graph_conv_network_forward.1} parent=103 // pred_check_branch
            %331 = sbr.rel (%p315) target = $region130
          $region129: #{graph_conv_network_forward.1} parent=103 // pred_region
            %s332 = sand.u32 8, 7
          $region130: #{graph_conv_network_forward.1} parent=103 // pred_fallthru
            _
        $region104: #{graph_conv_network_forward.1} parent=31 // pred_fallthru
          _
        // Predicated region
        $region105: #{graph_conv_network_forward.1} parent=31 // pred_check
          %p299 = pneg %p295
        $region106: #{graph_conv_network_forward.1} parent=31 // pred_check_branch
          %301 = sbr.rel (%p299) target = $region108
        $region107: #{graph_conv_network_forward.1} parent=31 // pred_region
          %s302 = sshll.u32 1, 8
          %s303 = ssub.s32 %s302, 1
          loop: start=0, step=1, limit=1
          $region109: #{graph_conv_network_forward.1} parent=107 // loop_pre_header
            _
          $region110: #{graph_conv_network_forward.1} parent=107 // loop_header
            %s305 = sphi 0, %s309
            %p306 = scmp.ge.s32.totalorder %s305, 1
            %s310 = sphi %s4, %s4
            %s311 = sphi [#allocation5], [#allocation5]
          $region111: #{graph_conv_network_forward.1} parent=107 // loop_header_branch
            %308 = sbr.rel (%p306) target = $region115
          $region112: #{graph_conv_network_forward.1} parent=107 // loop_body
            %v312 = vld [vmem:[%s310] sm:%s303]
            %313 = vst [vmem:[%s311] sm:%s303] %v312
          $region113: #{graph_conv_network_forward.1} parent=107 // loop_footer
            %s309 = sadd.s32 1, %s305
          $region114: #{graph_conv_network_forward.1} parent=107 // loop_footer_branch
            %304 = sbr.rel target = $region110
          $region115: #{graph_conv_network_forward.1} parent=107 // loop_exit
            _
        $region108: #{graph_conv_network_forward.1} parent=31 // pred_fallthru
          _
        // Predicated region
        $region131: #{graph_conv_network_forward.1} parent=31 // pred_check
          _
        $region132: #{graph_conv_network_forward.1} parent=31 // pred_check_branch
          %335 = sbr.rel (0) target = $region134
        $region133: #{graph_conv_network_forward.1} parent=31 // pred_region
          %336 = vsyncadd %s293, 128
        $region134: #{graph_conv_network_forward.1} parent=31 // pred_fallthru
          _
        %s337 = scalar_lea.sflag [#allocation7], 3
        %p339 = scmp.lt.u32.totalorder 64, 8
        %p340 = pneg %p339
        // Predicated region
        $region135: #{graph_conv_network_forward.1} parent=31 // pred_check
          _
        $region136: #{graph_conv_network_forward.1} parent=31 // pred_check_branch
          %342 = sbr.rel (%p339) target = $region138
        $region137: #{graph_conv_network_forward.1} parent=31 // pred_region
          %s358 = sand.u32 64, 7
          %p359 = scmp.eq.s32.totalorder %s358, 0
          // Predicated region
          $region150: #{graph_conv_network_forward.1} parent=137 // pred_check
            %p360 = pneg %p359
          $region151: #{graph_conv_network_forward.1} parent=137 // pred_check_branch
            %362 = sbr.rel (%p360) target = $region153
          $region152: #{graph_conv_network_forward.1} parent=137 // pred_region
            loop: start=0, step=1, limit=1
            $region154: #{graph_conv_network_forward.1} parent=152 // loop_pre_header
              _
            $region155: #{graph_conv_network_forward.1} parent=152 // loop_header
              %s364 = sphi 0, %s368
              %p365 = scmp.ge.s32.totalorder %s364, 1
              %s369 = sphi %s5, %s5
              %s370 = sphi [#allocation6], [#allocation6]
            $region156: #{graph_conv_network_forward.1} parent=152 // loop_header_branch
              %367 = sbr.rel (%p365) target = $region160
            $region157: #{graph_conv_network_forward.1} parent=152 // loop_body
              %v371 = vld [vmem:[%s369] sm:$0xff]
              %372 = vst [vmem:[%s370] sm:$0xff] %v371
              %v373 = vld [vmem:[%s369 + $0x8] sm:$0xff]
              %374 = vst [vmem:[%s370 + $0x8] sm:$0xff] %v373
              %v375 = vld [vmem:[%s369 + $0x10] sm:$0xff]
              %376 = vst [vmem:[%s370 + $0x10] sm:$0xff] %v375
              %v377 = vld [vmem:[%s369 + $0x18] sm:$0xff]
              %378 = vst [vmem:[%s370 + $0x18] sm:$0xff] %v377
              %v379 = vld [vmem:[%s369 + $0x20] sm:$0xff]
              %380 = vst [vmem:[%s370 + $0x20] sm:$0xff] %v379
              %v381 = vld [vmem:[%s369 + $0x28] sm:$0xff]
              %382 = vst [vmem:[%s370 + $0x28] sm:$0xff] %v381
              %v383 = vld [vmem:[%s369 + $0x30] sm:$0xff]
              %384 = vst [vmem:[%s370 + $0x30] sm:$0xff] %v383
              %v385 = vld [vmem:[%s369 + $0x38] sm:$0xff]
              %386 = vst [vmem:[%s370 + $0x38] sm:$0xff] %v385
            $region158: #{graph_conv_network_forward.1} parent=152 // loop_footer
              %s368 = sadd.s32 1, %s364
            $region159: #{graph_conv_network_forward.1} parent=152 // loop_footer_branch
              %363 = sbr.rel target = $region155
            $region160: #{graph_conv_network_forward.1} parent=152 // loop_exit
              _
          $region153: #{graph_conv_network_forward.1} parent=137 // pred_fallthru
            _
          %p387 = pneg %p359
          // Predicated region
          $region161: #{graph_conv_network_forward.1} parent=137 // pred_check
            _
          $region162: #{graph_conv_network_forward.1} parent=137 // pred_check_branch
            %389 = sbr.rel (%p359) target = $region164
          $region163: #{graph_conv_network_forward.1} parent=137 // pred_region
            %s390 = sand.u32 64, 7
          $region164: #{graph_conv_network_forward.1} parent=137 // pred_fallthru
            _
        $region138: #{graph_conv_network_forward.1} parent=31 // pred_fallthru
          _
        // Predicated region
        $region139: #{graph_conv_network_forward.1} parent=31 // pred_check
          %p343 = pneg %p339
        $region140: #{graph_conv_network_forward.1} parent=31 // pred_check_branch
          %345 = sbr.rel (%p343) target = $region142
        $region141: #{graph_conv_network_forward.1} parent=31 // pred_region
          %s346 = sshll.u32 1, 64
          %s347 = ssub.s32 %s346, 1
          loop: start=0, step=1, limit=1
          $region143: #{graph_conv_network_forward.1} parent=141 // loop_pre_header
            _
          $region144: #{graph_conv_network_forward.1} parent=141 // loop_header
            %s349 = sphi 0, %s353
            %p350 = scmp.ge.s32.totalorder %s349, 1
            %s354 = sphi %s5, %s5
            %s355 = sphi [#allocation6], [#allocation6]
          $region145: #{graph_conv_network_forward.1} parent=141 // loop_header_branch
            %352 = sbr.rel (%p350) target = $region149
          $region146: #{graph_conv_network_forward.1} parent=141 // loop_body
            %v356 = vld [vmem:[%s354] sm:%s347]
            %357 = vst [vmem:[%s355] sm:%s347] %v356
          $region147: #{graph_conv_network_forward.1} parent=141 // loop_footer
            %s353 = sadd.s32 1, %s349
          $region148: #{graph_conv_network_forward.1} parent=141 // loop_footer_branch
            %348 = sbr.rel target = $region144
          $region149: #{graph_conv_network_forward.1} parent=141 // loop_exit
            _
        $region142: #{graph_conv_network_forward.1} parent=31 // pred_fallthru
          _
        // Predicated region
        $region165: #{graph_conv_network_forward.1} parent=31 // pred_check
          _
        $region166: #{graph_conv_network_forward.1} parent=31 // pred_check_branch
          %393 = sbr.rel (0) target = $region168
        $region167: #{graph_conv_network_forward.1} parent=31 // pred_region
          %394 = vsyncadd %s337, 1024
        $region168: #{graph_conv_network_forward.1} parent=31 // pred_fallthru
          _
      $region32: #{graph_conv_network_forward.1} parent=27 // pred_fallthru
        _
      %v395 = vld [vmem:[#allocation2] sm:$0xff]
      %v396 = vld [vmem:[#allocation2 + $0x8] sm:$0xff]
      %v397 = vld [vmem:[#allocation2 + $0x10] sm:$0xff]
      %v398 = vld [vmem:[#allocation2 + $0x18] sm:$0xff]
      %v399 = vld [vmem:[#allocation2 + $0x20] sm:$0xff]
      %v400 = vld [vmem:[#allocation2 + $0x28] sm:$0xff]
      %v401 = vld [vmem:[#allocation2 + $0x30] sm:$0xff]
      %v402 = vld [vmem:[#allocation2 + $0x38] sm:$0xff]
      %v403 = vld [vmem:[#allocation2 + $0x40] sm:$0xff]
      %v404 = vld [vmem:[#allocation2 + $0x48] sm:$0xff]
      %v405 = vld [vmem:[#allocation2 + $0x50] sm:$0xff]
      %v406 = vld [vmem:[#allocation2 + $0x58] sm:$0xff]
      %v407 = vld [vmem:[#allocation2 + $0x60] sm:$0xff]
      %v408 = vld [vmem:[#allocation2 + $0x68] sm:$0xff]
      %v409 = vld [vmem:[#allocation2 + $0x70] sm:$0xff]
      %v410 = vld [vmem:[#allocation2 + $0x78] sm:$0xff]
      %v411 = vpack.c.bf16 %v396, %v395
      %v412 = vpack.c.bf16 %v398, %v397
      %v413 = vpack.c.bf16 %v400, %v399
      %v414 = vpack.c.bf16 %v402, %v401
      %v415 = vpack.c.bf16 %v404, %v403
      %v416 = vpack.c.bf16 %v406, %v405
      %v417 = vpack.c.bf16 %v408, %v407
      %v418 = vpack.c.bf16 %v410, %v409
      %v419 = vld [vmem:[#allocation3] sm:$0xf]
      %v420 = vld [vmem:[#allocation3 + $0x4] sm:$0xf]
      %v421 = vld [vmem:[#allocation3 + $0x8] sm:$0xf]
      %v422 = vld [vmem:[#allocation3 + $0xc] sm:$0xf]
      %v423 = vld [vmem:[#allocation3 + $0x10] sm:$0xf]
      %v424 = vld [vmem:[#allocation3 + $0x14] sm:$0xf]
      %v425 = vld [vmem:[#allocation3 + $0x18] sm:$0xf]
      %v426 = vld [vmem:[#allocation3 + $0x1c] sm:$0xf]
      %v427 = vld [vmem:[#allocation3 + $0x20] sm:$0xf]
      %v428 = vld [vmem:[#allocation3 + $0x24] sm:$0xf]
      %v429 = vld [vmem:[#allocation3 + $0x28] sm:$0xf]
      %v430 = vld [vmem:[#allocation3 + $0x2c] sm:$0xf]
      %v431 = vld [vmem:[#allocation3 + $0x30] sm:$0xf]
      %v432 = vld [vmem:[#allocation3 + $0x34] sm:$0xf]
      %v433 = vld [vmem:[#allocation3 + $0x38] sm:$0xf]
      %v434 = vld [vmem:[#allocation3 + $0x3c] sm:$0xf]
      %v451 = vunpack.c.l.b16 %v419
      %v452 = vunpack.c.l.b16 %v420
      %v453 = vunpack.c.l.b16 %v421
      %v454 = vunpack.c.l.b16 %v422
      %v455 = vunpack.c.l.b16 %v423
      %v456 = vunpack.c.l.b16 %v424
      %v457 = vunpack.c.l.b16 %v425
      %v458 = vunpack.c.l.b16 %v426
      %v459 = vunpack.c.l.b16 %v427
      %v460 = vunpack.c.l.b16 %v428
      %v461 = vunpack.c.l.b16 %v429
      %v462 = vunpack.c.l.b16 %v430
      %v463 = vunpack.c.l.b16 %v431
      %v464 = vunpack.c.l.b16 %v432
      %v465 = vunpack.c.l.b16 %v433
      %v466 = vunpack.c.l.b16 %v434
      %v467 = vpack.c.b16 %v452, %v451
      %v468 = vpack.c.b16 %v454, %v453
      %v469 = vpack.c.b16 %v456, %v455
      %v470 = vpack.c.b16 %v458, %v457
      %v471 = vpack.c.b16 %v460, %v459
      %v472 = vpack.c.b16 %v462, %v461
      %v473 = vpack.c.b16 %v464, %v463
      %v474 = vpack.c.b16 %v466, %v465
      %483 = vmatprep.subr.bf16.mxu0 0
      %484 = vmatpush1.bf16.msra.mxu0 %v418
      %485 = vmatprep.subr.bf16.mxu0 0
      %486 = vmatpush1.bf16.msra.mxu0 %v417
      %487 = vmatprep.subr.bf16.mxu0 0
      %488 = vmatpush1.bf16.msra.mxu0 %v416
      %489 = vmatprep.subr.bf16.mxu0 0
      %490 = vmatpush1.bf16.msra.mxu0 %v415
      %491 = vmatprep.subr.bf16.mxu0 0
      %492 = vmatpush1.bf16.msra.mxu0 %v414
      %493 = vmatprep.subr.bf16.mxu0 0
      %494 = vmatpush1.bf16.msra.mxu0 %v413
      %495 = vmatprep.subr.bf16.mxu0 0
      %496 = vmatpush1.bf16.msra.mxu0 %v412
      %497 = vmatprep.subr.bf16.mxu0 0
      %498 = vmatpush1.bf16.msra.mxu0 %v411
      %499 = vmatprep.subr.bf16.mxu0 0
      %500 = vmatpush2.bf16.msra.mxu0 0
      %501 = vmatprep.subr.bf16.mxu0 0
      %502 = vmatpush2.bf16.msra.mxu0 0
      %503 = vmatprep.subr.bf16.mxu0 0
      %504 = vmatpush2.bf16.msra.mxu0 0
      %505 = vmatprep.subr.bf16.mxu0 0
      %506 = vmatpush2.bf16.msra.mxu0 0
      %507 = vmatprep.subr.bf16.mxu0 0
      %508 = vmatpush2.bf16.msra.mxu0 0
      %509 = vmatprep.subr.bf16.mxu0 0
      %510 = vmatpush2.bf16.msra.mxu0 0
      %511 = vmatprep.subr.bf16.mxu0 0
      %512 = vmatpush2.bf16.msra.mxu0 0
      %513 = vmatprep.subr.bf16.mxu0 0
      %514 = vmatpush2.bf16.msra.mxu0 0
      %515 = vmatprep.mubr.bf16.mxu0 0
      %516 = vmatmul.mubr.bf16.gmra.mxu0 %v467
      %v517 = vpop.f32.mrf.mxu0
      %v518 = vadd.f32 0.0, %v517
      %v519 = vpop.f32.mrf.mxu0
      %v520 = vpop.f32.mrf.mxu0
      %v521 = vadd.f32 0.0, %v520
      %v522 = vpop.f32.mrf.mxu0
      %523 = vmatprep.mubr.bf16.mxu0 0
      %524 = vmatmul.mubr.bf16.gmra.mxu0 %v468
      %v525 = vpop.f32.mrf.mxu0
      %v526 = vadd.f32 0.0, %v525
      %v527 = vpop.f32.mrf.mxu0
      %v528 = vpop.f32.mrf.mxu0
      %v529 = vadd.f32 0.0, %v528
      %v530 = vpop.f32.mrf.mxu0
      %531 = vmatprep.mubr.bf16.mxu0 0
      %532 = vmatmul.mubr.bf16.gmra.mxu0 %v469
      %v533 = vpop.f32.mrf.mxu0
      %v534 = vadd.f32 0.0, %v533
      %v535 = vpop.f32.mrf.mxu0
      %v536 = vpop.f32.mrf.mxu0
      %v537 = vadd.f32 0.0, %v536
      %v538 = vpop.f32.mrf.mxu0
      %539 = vmatprep.mubr.bf16.mxu0 0
      %540 = vmatmul.mubr.bf16.gmra.mxu0 %v470
      %v541 = vpop.f32.mrf.mxu0
      %v542 = vadd.f32 0.0, %v541
      %v543 = vpop.f32.mrf.mxu0
      %v544 = vpop.f32.mrf.mxu0
      %v545 = vadd.f32 0.0, %v544
      %v546 = vpop.f32.mrf.mxu0
      %547 = vmatprep.mubr.bf16.mxu0 0
      %548 = vmatmul.mubr.bf16.gmra.mxu0 %v471
      %v549 = vpop.f32.mrf.mxu0
      %v550 = vadd.f32 0.0, %v549
      %v551 = vpop.f32.mrf.mxu0
      %v552 = vpop.f32.mrf.mxu0
      %v553 = vadd.f32 0.0, %v552
      %v554 = vpop.f32.mrf.mxu0
      %555 = vmatprep.mubr.bf16.mxu0 0
      %556 = vmatmul.mubr.bf16.gmra.mxu0 %v472
      %v557 = vpop.f32.mrf.mxu0
      %v558 = vadd.f32 0.0, %v557
      %v559 = vpop.f32.mrf.mxu0
      %v560 = vpop.f32.mrf.mxu0
      %v561 = vadd.f32 0.0, %v560
      %v562 = vpop.f32.mrf.mxu0
      %563 = vmatprep.mubr.bf16.mxu0 0
      %564 = vmatmul.mubr.bf16.gmra.mxu0 %v473
      %v565 = vpop.f32.mrf.mxu0
      %v566 = vadd.f32 0.0, %v565
      %v567 = vpop.f32.mrf.mxu0
      %v568 = vpop.f32.mrf.mxu0
      %v569 = vadd.f32 0.0, %v568
      %v570 = vpop.f32.mrf.mxu0
      %571 = vmatprep.mubr.bf16.mxu0 0
      %572 = vmatmul.mubr.bf16.gmra.mxu0 %v474
      %v573 = vpop.f32.mrf.mxu0
      %v574 = vadd.f32 0.0, %v573
      %v575 = vpop.f32.mrf.mxu0
      %v576 = vpop.f32.mrf.mxu0
      %v577 = vadd.f32 0.0, %v576
      %v578 = vpop.f32.mrf.mxu0
      %579 = vdwg.mxu0
      %v580 = vld [vmem:[%s145] sm:$0xf]
      %v581 = vld [vmem:[%s145 + $0x4] sm:$0xf]
      %v582 = vld [vmem:[%s145 + $0x8] sm:$0xf]
      %v583 = vld [vmem:[%s145 + $0xc] sm:$0xf]
      %v584 = vld [vmem:[%s145 + $0x10] sm:$0xf]
      %v585 = vld [vmem:[%s145 + $0x14] sm:$0xf]
      %v586 = vld [vmem:[%s145 + $0x18] sm:$0xf]
      %v587 = vld [vmem:[%s145 + $0x1c] sm:$0xf]
      %v588 = vld [vmem:[%s145 + $0x20] sm:$0xf]
      %v589 = vld [vmem:[%s145 + $0x24] sm:$0xf]
      %v590 = vld [vmem:[%s145 + $0x28] sm:$0xf]
      %v591 = vld [vmem:[%s145 + $0x2c] sm:$0xf]
      %v592 = vld [vmem:[%s145 + $0x30] sm:$0xf]
      %v593 = vld [vmem:[%s145 + $0x34] sm:$0xf]
      %v594 = vld [vmem:[%s145 + $0x38] sm:$0xf]
      %v595 = vld [vmem:[%s145 + $0x3c] sm:$0xf]
      %v596 = vld [vmem:[%s145 + $0x40] sm:$0xf]
      %v597 = vld [vmem:[%s145 + $0x44] sm:$0xf]
      %v598 = vld [vmem:[%s145 + $0x48] sm:$0xf]
      %v599 = vld [vmem:[%s145 + $0x4c] sm:$0xf]
      %v600 = vld [vmem:[%s145 + $0x50] sm:$0xf]
      %v601 = vld [vmem:[%s145 + $0x54] sm:$0xf]
      %v602 = vld [vmem:[%s145 + $0x58] sm:$0xf]
      %v603 = vld [vmem:[%s145 + $0x5c] sm:$0xf]
      %v604 = vld [vmem:[%s145 + $0x60] sm:$0xf]
      %v605 = vld [vmem:[%s145 + $0x64] sm:$0xf]
      %v606 = vld [vmem:[%s145 + $0x68] sm:$0xf]
      %v607 = vld [vmem:[%s145 + $0x6c] sm:$0xf]
      %v608 = vld [vmem:[%s145 + $0x70] sm:$0xf]
      %v609 = vld [vmem:[%s145 + $0x74] sm:$0xf]
      %v610 = vld [vmem:[%s145 + $0x78] sm:$0xf]
      %v611 = vld [vmem:[%s145 + $0x7c] sm:$0xf]
      %v612 = vld [vmem:[%s149] sm:$0xff]
      %v613 = vpack.c.bf16 %v521, %v518
      %v614 = vpack.c.bf16 %v529, %v526
      %v615 = vpack.c.bf16 %v537, %v534
      %v616 = vpack.c.bf16 %v545, %v542
      %v617 = vpack.c.bf16 %v553, %v550
      %v618 = vpack.c.bf16 %v561, %v558
      %v619 = vpack.c.bf16 %v569, %v566
      %v620 = vpack.c.bf16 %v577, %v574
      %v629 = vunpack.c.l.b16 %v613
      %v630 = vunpack.c.h.b16 %v613
      %v631 = vunpack.c.l.b16 %v614
      %v632 = vunpack.c.h.b16 %v614
      %v633 = vunpack.c.l.b16 %v615
      %v634 = vunpack.c.h.b16 %v615
      %v635 = vunpack.c.l.b16 %v616
      %v636 = vunpack.c.h.b16 %v616
      %v637 = vunpack.c.l.b16 %v617
      %v638 = vunpack.c.h.b16 %v617
      %v639 = vunpack.c.l.b16 %v618
      %v640 = vunpack.c.h.b16 %v618
      %v641 = vunpack.c.l.b16 %v619
      %v642 = vunpack.c.h.b16 %v619
      %v643 = vunpack.c.l.b16 %v620
      %v644 = vunpack.c.h.b16 %v620
      %v645 = vpack.c.b16 %v629, %v629
      %v646 = vpack.c.b16 %v630, %v630
      %v647 = vpack.c.b16 %v631, %v631
      %v648 = vpack.c.b16 %v632, %v632
      %v649 = vpack.c.b16 %v633, %v633
      %v650 = vpack.c.b16 %v634, %v634
      %v651 = vpack.c.b16 %v635, %v635
      %v652 = vpack.c.b16 %v636, %v636
      %v653 = vpack.c.b16 %v637, %v637
      %v654 = vpack.c.b16 %v638, %v638
      %v655 = vpack.c.b16 %v639, %v639
      %v656 = vpack.c.b16 %v640, %v640
      %v657 = vpack.c.b16 %v641, %v641
      %v658 = vpack.c.b16 %v642, %v642
      %v659 = vpack.c.b16 %v643, %v643
      %v660 = vpack.c.b16 %v644, %v644
      %677 = vst [vmem:[#allocation4] sm:$0xf] %v645
      %678 = vst [vmem:[#allocation4 + $0x8] sm:$0xf] %v646
      %679 = vst [vmem:[#allocation4 + $0x10] sm:$0xf] %v647
      %680 = vst [vmem:[#allocation4 + $0x18] sm:$0xf] %v648
      %681 = vst [vmem:[#allocation4 + $0x20] sm:$0xf] %v649
      %682 = vst [vmem:[#allocation4 + $0x28] sm:$0xf] %v650
      %683 = vst [vmem:[#allocation4 + $0x30] sm:$0xf] %v651
      %684 = vst [vmem:[#allocation4 + $0x38] sm:$0xf] %v652
      %685 = vst [vmem:[#allocation4 + $0x40] sm:$0xf] %v653
      %686 = vst [vmem:[#allocation4 + $0x48] sm:$0xf] %v654
      %687 = vst [vmem:[#allocation4 + $0x50] sm:$0xf] %v655
      %688 = vst [vmem:[#allocation4 + $0x58] sm:$0xf] %v656
      %689 = vst [vmem:[#allocation4 + $0x60] sm:$0xf] %v657
      %690 = vst [vmem:[#allocation4 + $0x68] sm:$0xf] %v658
      %691 = vst [vmem:[#allocation4 + $0x70] sm:$0xf] %v659
      %692 = vst [vmem:[#allocation4 + $0x78] sm:$0xf] %v660
      %v701 = vunpack.c.l.b16 %v411
      %v702 = vunpack.c.h.b16 %v411
      %v703 = vunpack.c.l.b16 %v412
      %v704 = vunpack.c.h.b16 %v412
      %v705 = vunpack.c.l.b16 %v413
      %v706 = vunpack.c.h.b16 %v413
      %v707 = vunpack.c.l.b16 %v414
      %v708 = vunpack.c.h.b16 %v414
      %v709 = vunpack.c.l.b16 %v415
      %v710 = vunpack.c.h.b16 %v415
      %v711 = vunpack.c.l.b16 %v416
      %v712 = vunpack.c.h.b16 %v416
      %v713 = vunpack.c.l.b16 %v417
      %v714 = vunpack.c.h.b16 %v417
      %v715 = vunpack.c.l.b16 %v418
      %v716 = vunpack.c.h.b16 %v418
      %v717 = vpack.c.b16 %v701, %v701
      %v718 = vpack.c.b16 %v702, %v702
      %v719 = vpack.c.b16 %v703, %v703
      %v720 = vpack.c.b16 %v704, %v704
      %v721 = vpack.c.b16 %v705, %v705
      %v722 = vpack.c.b16 %v706, %v706
      %v723 = vpack.c.b16 %v707, %v707
      %v724 = vpack.c.b16 %v708, %v708
      %v725 = vpack.c.b16 %v709, %v709
      %v726 = vpack.c.b16 %v710, %v710
      %v727 = vpack.c.b16 %v711, %v711
      %v728 = vpack.c.b16 %v712, %v712
      %v729 = vpack.c.b16 %v713, %v713
      %v730 = vpack.c.b16 %v714, %v714
      %v731 = vpack.c.b16 %v715, %v715
      %v732 = vpack.c.b16 %v716, %v716
      %749 = vst [vmem:[#allocation4 + $0x4] sm:$0xf] %v717
      %750 = vst [vmem:[#allocation4 + $0xc] sm:$0xf] %v718
      %751 = vst [vmem:[#allocation4 + $0x14] sm:$0xf] %v719
      %752 = vst [vmem:[#allocation4 + $0x1c] sm:$0xf] %v720
      %753 = vst [vmem:[#allocation4 + $0x24] sm:$0xf] %v721
      %754 = vst [vmem:[#allocation4 + $0x2c] sm:$0xf] %v722
      %755 = vst [vmem:[#allocation4 + $0x34] sm:$0xf] %v723
      %756 = vst [vmem:[#allocation4 + $0x3c] sm:$0xf] %v724
      %757 = vst [vmem:[#allocation4 + $0x44] sm:$0xf] %v725
      %758 = vst [vmem:[#allocation4 + $0x4c] sm:$0xf] %v726
      %759 = vst [vmem:[#allocation4 + $0x54] sm:$0xf] %v727
      %760 = vst [vmem:[#allocation4 + $0x5c] sm:$0xf] %v728
      %761 = vst [vmem:[#allocation4 + $0x64] sm:$0xf] %v729
      %762 = vst [vmem:[#allocation4 + $0x6c] sm:$0xf] %v730
      %763 = vst [vmem:[#allocation4 + $0x74] sm:$0xf] %v731
      %764 = vst [vmem:[#allocation4 + $0x7c] sm:$0xf] %v732
      %v765 = vld [vmem:[#allocation4] sm:$0xff]
      %v766 = vld [vmem:[#allocation4 + $0x8] sm:$0xff]
      %v767 = vld [vmem:[#allocation4 + $0x10] sm:$0xff]
      %v768 = vld [vmem:[#allocation4 + $0x18] sm:$0xff]
      %v769 = vld [vmem:[#allocation4 + $0x20] sm:$0xff]
      %v770 = vld [vmem:[#allocation4 + $0x28] sm:$0xff]
      %v771 = vld [vmem:[#allocation4 + $0x30] sm:$0xff]
      %v772 = vld [vmem:[#allocation4 + $0x38] sm:$0xff]
      %v773 = vld [vmem:[#allocation4 + $0x40] sm:$0xff]
      %v774 = vld [vmem:[#allocation4 + $0x48] sm:$0xff]
      %v775 = vld [vmem:[#allocation4 + $0x50] sm:$0xff]
      %v776 = vld [vmem:[#allocation4 + $0x58] sm:$0xff]
      %v777 = vld [vmem:[#allocation4 + $0x60] sm:$0xff]
      %v778 = vld [vmem:[#allocation4 + $0x68] sm:$0xff]
      %v779 = vld [vmem:[#allocation4 + $0x70] sm:$0xff]
      %v780 = vld [vmem:[#allocation4 + $0x78] sm:$0xff]
      %v781 = vlaneseq
      %v782 = vshrl.u32 %v781, 7
      %v783 = vsub.s32 0, %v782
      %v784 = vrot.slane %v612, %v783
      %v801 = vunpack.c.l.b16 %v765
      %v802 = vunpack.c.h.b16 %v765
      %v803 = vunpack.c.l.b16 %v766
      %v804 = vunpack.c.h.b16 %v766
      %v805 = vunpack.c.l.b16 %v767
      %v806 = vunpack.c.h.b16 %v767
      %v807 = vunpack.c.l.b16 %v768
      %v808 = vunpack.c.h.b16 %v768
      %v809 = vunpack.c.l.b16 %v769
      %v810 = vunpack.c.h.b16 %v769
      %v811 = vunpack.c.l.b16 %v770
      %v812 = vunpack.c.h.b16 %v770
      %v813 = vunpack.c.l.b16 %v771
      %v814 = vunpack.c.h.b16 %v771
      %v815 = vunpack.c.l.b16 %v772
      %v816 = vunpack.c.h.b16 %v772
      %v817 = vunpack.c.l.b16 %v773
      %v818 = vunpack.c.h.b16 %v773
      %v819 = vunpack.c.l.b16 %v774
      %v820 = vunpack.c.h.b16 %v774
      %v821 = vunpack.c.l.b16 %v775
      %v822 = vunpack.c.h.b16 %v775
      %v823 = vunpack.c.l.b16 %v776
      %v824 = vunpack.c.h.b16 %v776
      %v825 = vunpack.c.l.b16 %v777
      %v826 = vunpack.c.h.b16 %v777
      %v827 = vunpack.c.l.b16 %v778
      %v828 = vunpack.c.h.b16 %v778
      %v829 = vunpack.c.l.b16 %v779
      %v830 = vunpack.c.h.b16 %v779
      %v831 = vunpack.c.l.b16 %v780
      %v832 = vunpack.c.h.b16 %v780
      %v833 = vpack.c.b16 %v803, %v801
      %v834 = vpack.c.b16 %v804, %v802
      %v835 = vpack.c.b16 %v807, %v805
      %v836 = vpack.c.b16 %v808, %v806
      %v837 = vpack.c.b16 %v811, %v809
      %v838 = vpack.c.b16 %v812, %v810
      %v839 = vpack.c.b16 %v815, %v813
      %v840 = vpack.c.b16 %v816, %v814
      %v841 = vpack.c.b16 %v819, %v817
      %v842 = vpack.c.b16 %v820, %v818
      %v843 = vpack.c.b16 %v823, %v821
      %v844 = vpack.c.b16 %v824, %v822
      %v845 = vpack.c.b16 %v827, %v825
      %v846 = vpack.c.b16 %v828, %v826
      %v847 = vpack.c.b16 %v831, %v829
      %v848 = vpack.c.b16 %v832, %v830
      %v897 = vunpack.c.l.b16 %v580
      %v898 = vunpack.c.l.b16 %v581
      %v899 = vunpack.c.l.b16 %v582
      %v900 = vunpack.c.l.b16 %v583
      %v901 = vunpack.c.l.b16 %v584
      %v902 = vunpack.c.l.b16 %v585
      %v903 = vunpack.c.l.b16 %v586
      %v904 = vunpack.c.l.b16 %v587
      %v905 = vunpack.c.l.b16 %v588
      %v906 = vunpack.c.l.b16 %v589
      %v907 = vunpack.c.l.b16 %v590
      %v908 = vunpack.c.l.b16 %v591
      %v909 = vunpack.c.l.b16 %v592
      %v910 = vunpack.c.l.b16 %v593
      %v911 = vunpack.c.l.b16 %v594
      %v912 = vunpack.c.l.b16 %v595
      %v913 = vunpack.c.l.b16 %v596
      %v914 = vunpack.c.l.b16 %v597
      %v915 = vunpack.c.l.b16 %v598
      %v916 = vunpack.c.l.b16 %v599
      %v917 = vunpack.c.l.b16 %v600
      %v918 = vunpack.c.l.b16 %v601
      %v919 = vunpack.c.l.b16 %v602
      %v920 = vunpack.c.l.b16 %v603
      %v921 = vunpack.c.l.b16 %v604
      %v922 = vunpack.c.l.b16 %v605
      %v923 = vunpack.c.l.b16 %v606
      %v924 = vunpack.c.l.b16 %v607
      %v925 = vunpack.c.l.b16 %v608
      %v926 = vunpack.c.l.b16 %v609
      %v927 = vunpack.c.l.b16 %v610
      %v928 = vunpack.c.l.b16 %v611
      %v929 = vpack.c.b16 %v898, %v897
      %v930 = vpack.c.b16 %v900, %v899
      %v931 = vpack.c.b16 %v902, %v901
      %v932 = vpack.c.b16 %v904, %v903
      %v933 = vpack.c.b16 %v906, %v905
      %v934 = vpack.c.b16 %v908, %v907
      %v935 = vpack.c.b16 %v910, %v909
      %v936 = vpack.c.b16 %v912, %v911
      %v937 = vpack.c.b16 %v914, %v913
      %v938 = vpack.c.b16 %v916, %v915
      %v939 = vpack.c.b16 %v918, %v917
      %v940 = vpack.c.b16 %v920, %v919
      %v941 = vpack.c.b16 %v922, %v921
      %v942 = vpack.c.b16 %v924, %v923
      %v943 = vpack.c.b16 %v926, %v925
      %v944 = vpack.c.b16 %v928, %v927
      %961 = vmatprep.subr.bf16.mxu0 0
      %962 = vmatpush1.bf16.msra.mxu0 %v936
      %963 = vmatprep.subr.bf16.mxu0 0
      %964 = vmatpush1.bf16.msra.mxu0 %v935
      %965 = vmatprep.subr.bf16.mxu0 0
      %966 = vmatpush1.bf16.msra.mxu0 %v934
      %967 = vmatprep.subr.bf16.mxu0 0
      %968 = vmatpush1.bf16.msra.mxu0 %v933
      %969 = vmatprep.subr.bf16.mxu0 0
      %970 = vmatpush1.bf16.msra.mxu0 %v932
      %971 = vmatprep.subr.bf16.mxu0 0
      %972 = vmatpush1.bf16.msra.mxu0 %v931
      %973 = vmatprep.subr.bf16.mxu0 0
      %974 = vmatpush1.bf16.msra.mxu0 %v930
      %975 = vmatprep.subr.bf16.mxu0 0
      %976 = vmatpush1.bf16.msra.mxu0 %v929
      %977 = vmatprep.subr.bf16.mxu0 0
      %978 = vmatpush2.bf16.msra.mxu0 %v944
      %979 = vmatprep.subr.bf16.mxu0 0
      %980 = vmatpush2.bf16.msra.mxu0 %v943
      %981 = vmatprep.subr.bf16.mxu0 0
      %982 = vmatpush2.bf16.msra.mxu0 %v942
      %983 = vmatprep.subr.bf16.mxu0 0
      %984 = vmatpush2.bf16.msra.mxu0 %v941
      %985 = vmatprep.subr.bf16.mxu0 0
      %986 = vmatpush2.bf16.msra.mxu0 %v940
      %987 = vmatprep.subr.bf16.mxu0 0
      %988 = vmatpush2.bf16.msra.mxu0 %v939
      %989 = vmatprep.subr.bf16.mxu0 0
      %990 = vmatpush2.bf16.msra.mxu0 %v938
      %991 = vmatprep.subr.bf16.mxu0 0
      %992 = vmatpush2.bf16.msra.mxu0 %v937
      %993 = vmatprep.mubr.bf16.mxu0 %v834
      %994 = vmatmul.mubr.bf16.gmra.mxu0 %v833
      %v995 = vpop.f32.mrf.mxu0
      %v996 = vadd.f32 %v784, %v995
      %v997 = vpop.f32.mrf.mxu0
      %v998 = vpop.f32.mrf.mxu0
      %v999 = vadd.f32 %v784, %v998
      %v1000 = vpop.f32.mrf.mxu0
      %1001 = vmatprep.mubr.bf16.mxu0 %v836
      %1002 = vmatmul.mubr.bf16.gmra.mxu0 %v835
      %v1003 = vpop.f32.mrf.mxu0
      %v1004 = vadd.f32 %v784, %v1003
      %v1005 = vpop.f32.mrf.mxu0
      %v1006 = vpop.f32.mrf.mxu0
      %v1007 = vadd.f32 %v784, %v1006
      %v1008 = vpop.f32.mrf.mxu0
      %1009 = vmatprep.mubr.bf16.mxu0 %v838
      %1010 = vmatmul.mubr.bf16.gmra.mxu0 %v837
      %v1011 = vpop.f32.mrf.mxu0
      %v1012 = vadd.f32 %v784, %v1011
      %v1013 = vpop.f32.mrf.mxu0
      %v1014 = vpop.f32.mrf.mxu0
      %v1015 = vadd.f32 %v784, %v1014
      %v1016 = vpop.f32.mrf.mxu0
      %1017 = vmatprep.mubr.bf16.mxu0 %v840
      %1018 = vmatmul.mubr.bf16.gmra.mxu0 %v839
      %v1019 = vpop.f32.mrf.mxu0
      %v1020 = vadd.f32 %v784, %v1019
      %v1021 = vpop.f32.mrf.mxu0
      %v1022 = vpop.f32.mrf.mxu0
      %v1023 = vadd.f32 %v784, %v1022
      %v1024 = vpop.f32.mrf.mxu0
      %1025 = vmatprep.mubr.bf16.mxu0 %v842
      %1026 = vmatmul.mubr.bf16.gmra.mxu0 %v841
      %v1027 = vpop.f32.mrf.mxu0
      %v1028 = vadd.f32 %v784, %v1027
      %v1029 = vpop.f32.mrf.mxu0
      %v1030 = vpop.f32.mrf.mxu0
      %v1031 = vadd.f32 %v784, %v1030
      %v1032 = vpop.f32.mrf.mxu0
      %1033 = vmatprep.mubr.bf16.mxu0 %v844
      %1034 = vmatmul.mubr.bf16.gmra.mxu0 %v843
      %v1035 = vpop.f32.mrf.mxu0
      %v1036 = vadd.f32 %v784, %v1035
      %v1037 = vpop.f32.mrf.mxu0
      %v1038 = vpop.f32.mrf.mxu0
      %v1039 = vadd.f32 %v784, %v1038
      %v1040 = vpop.f32.mrf.mxu0
      %1041 = vmatprep.mubr.bf16.mxu0 %v846
      %1042 = vmatmul.mubr.bf16.gmra.mxu0 %v845
      %v1043 = vpop.f32.mrf.mxu0
      %v1044 = vadd.f32 %v784, %v1043
      %v1045 = vpop.f32.mrf.mxu0
      %v1046 = vpop.f32.mrf.mxu0
      %v1047 = vadd.f32 %v784, %v1046
      %v1048 = vpop.f32.mrf.mxu0
      %1049 = vmatprep.mubr.bf16.mxu0 %v848
      %1050 = vmatmul.mubr.bf16.gmra.mxu0 %v847
      %v1051 = vpop.f32.mrf.mxu0
      %v1052 = vadd.f32 %v784, %v1051
      %v1053 = vpop.f32.mrf.mxu0
      %v1054 = vpop.f32.mrf.mxu0
      %v1055 = vadd.f32 %v784, %v1054
      %v1056 = vpop.f32.mrf.mxu0
      %1057 = vdwg.mxu0
      %1058 = vadd.xlane.f32.xlu0 %v996
      %v1059 = vpop.xlane.xlu0 %1058
      %1060 = vadd.xlane.f32.xlu0 %v999
      %v1061 = vpop.xlane.xlu0 %1060
      %1062 = vadd.xlane.f32.xlu0 %v1004
      %v1063 = vpop.xlane.xlu0 %1062
      %1064 = vadd.xlane.f32.xlu0 %v1007
      %v1065 = vpop.xlane.xlu0 %1064
      %1066 = vadd.xlane.f32.xlu0 %v1012
      %v1067 = vpop.xlane.xlu0 %1066
      %1068 = vadd.xlane.f32.xlu0 %v1015
      %v1069 = vpop.xlane.xlu0 %1068
      %1070 = vadd.xlane.f32.xlu0 %v1020
      %v1071 = vpop.xlane.xlu0 %1070
      %1072 = vadd.xlane.f32.xlu0 %v1023
      %v1073 = vpop.xlane.xlu0 %1072
      %1074 = vadd.xlane.f32.xlu0 %v1028
      %v1075 = vpop.xlane.xlu0 %1074
      %1076 = vadd.xlane.f32.xlu0 %v1031
      %v1077 = vpop.xlane.xlu0 %1076
      %1078 = vadd.xlane.f32.xlu0 %v1036
      %v1079 = vpop.xlane.xlu0 %1078
      %1080 = vadd.xlane.f32.xlu0 %v1039
      %v1081 = vpop.xlane.xlu0 %1080
      %1082 = vadd.xlane.f32.xlu0 %v1044
      %v1083 = vpop.xlane.xlu0 %1082
      %1084 = vadd.xlane.f32.xlu0 %v1047
      %v1085 = vpop.xlane.xlu0 %1084
      %1086 = vadd.xlane.f32.xlu0 %v1052
      %v1087 = vpop.xlane.xlu0 %1086
      %1088 = vadd.xlane.f32.xlu0 %v1055
      %v1089 = vpop.xlane.xlu0 %1088
      %v1090 = vmul.f32 %v1059, 0.03125
      %v1091 = vmul.f32 %v1061, 0.03125
      %v1092 = vmul.f32 %v1063, 0.03125
      %v1093 = vmul.f32 %v1065, 0.03125
      %v1094 = vmul.f32 %v1067, 0.03125
      %v1095 = vmul.f32 %v1069, 0.03125
      %v1096 = vmul.f32 %v1071, 0.03125
      %v1097 = vmul.f32 %v1073, 0.03125
      %v1098 = vmul.f32 %v1075, 0.03125
      %v1099 = vmul.f32 %v1077, 0.03125
      %v1100 = vmul.f32 %v1079, 0.03125
      %v1101 = vmul.f32 %v1081, 0.03125
      %v1102 = vmul.f32 %v1083, 0.03125
      %v1103 = vmul.f32 %v1085, 0.03125
      %v1104 = vmul.f32 %v1087, 0.03125
      %v1105 = vmul.f32 %v1089, 0.03125
      %v1106 = vmul.f32 %v996, %v996
      %v1107 = vmul.f32 %v999, %v999
      %v1108 = vmul.f32 %v1004, %v1004
      %v1109 = vmul.f32 %v1007, %v1007
      %v1110 = vmul.f32 %v1012, %v1012
      %v1111 = vmul.f32 %v1015, %v1015
      %v1112 = vmul.f32 %v1020, %v1020
      %v1113 = vmul.f32 %v1023, %v1023
      %v1114 = vmul.f32 %v1028, %v1028
      %v1115 = vmul.f32 %v1031, %v1031
      %v1116 = vmul.f32 %v1036, %v1036
      %v1117 = vmul.f32 %v1039, %v1039
      %v1118 = vmul.f32 %v1044, %v1044
      %v1119 = vmul.f32 %v1047, %v1047
      %v1120 = vmul.f32 %v1052, %v1052
      %v1121 = vmul.f32 %v1055, %v1055
      %1122 = vadd.xlane.f32.xlu0 %v1106
      %v1123 = vpop.xlane.xlu0 %1122
      %1124 = vadd.xlane.f32.xlu0 %v1107
      %v1125 = vpop.xlane.xlu0 %1124
      %1126 = vadd.xlane.f32.xlu0 %v1108
      %v1127 = vpop.xlane.xlu0 %1126
      %1128 = vadd.xlane.f32.xlu0 %v1109
      %v1129 = vpop.xlane.xlu0 %1128
      %1130 = vadd.xlane.f32.xlu0 %v1110
      %v1131 = vpop.xlane.xlu0 %1130
      %1132 = vadd.xlane.f32.xlu0 %v1111
      %v1133 = vpop.xlane.xlu0 %1132
      %1134 = vadd.xlane.f32.xlu0 %v1112
      %v1135 = vpop.xlane.xlu0 %1134
      %1136 = vadd.xlane.f32.xlu0 %v1113
      %v1137 = vpop.xlane.xlu0 %1136
      %1138 = vadd.xlane.f32.xlu0 %v1114
      %v1139 = vpop.xlane.xlu0 %1138
      %1140 = vadd.xlane.f32.xlu0 %v1115
      %v1141 = vpop.xlane.xlu0 %1140
      %1142 = vadd.xlane.f32.xlu0 %v1116
      %v1143 = vpop.xlane.xlu0 %1142
      %1144 = vadd.xlane.f32.xlu0 %v1117
      %v1145 = vpop.xlane.xlu0 %1144
      %1146 = vadd.xlane.f32.xlu0 %v1118
      %v1147 = vpop.xlane.xlu0 %1146
      %1148 = vadd.xlane.f32.xlu0 %v1119
      %v1149 = vpop.xlane.xlu0 %1148
      %1150 = vadd.xlane.f32.xlu0 %v1120
      %v1151 = vpop.xlane.xlu0 %1150
      %1152 = vadd.xlane.f32.xlu0 %v1121
      %v1153 = vpop.xlane.xlu0 %1152
      %v1154 = vmul.f32 %v1123, 0.03125
      %v1155 = vmul.f32 %v1125, 0.03125
      %v1156 = vmul.f32 %v1127, 0.03125
      %v1157 = vmul.f32 %v1129, 0.03125
      %v1158 = vmul.f32 %v1131, 0.03125
      %v1159 = vmul.f32 %v1133, 0.03125
      %v1160 = vmul.f32 %v1135, 0.03125
      %v1161 = vmul.f32 %v1137, 0.03125
      %v1162 = vmul.f32 %v1139, 0.03125
      %v1163 = vmul.f32 %v1141, 0.03125
      %v1164 = vmul.f32 %v1143, 0.03125
      %v1165 = vmul.f32 %v1145, 0.03125
      %v1166 = vmul.f32 %v1147, 0.03125
      %v1167 = vmul.f32 %v1149, 0.03125
      %v1168 = vmul.f32 %v1151, 0.03125
      %v1169 = vmul.f32 %v1153, 0.03125
      %v1170 = vmul.f32 %v1090, %v1090
      %v1171 = vmul.f32 %v1091, %v1091
      %v1172 = vmul.f32 %v1092, %v1092
      %v1173 = vmul.f32 %v1093, %v1093
      %v1174 = vmul.f32 %v1094, %v1094
      %v1175 = vmul.f32 %v1095, %v1095
      %v1176 = vmul.f32 %v1096, %v1096
      %v1177 = vmul.f32 %v1097, %v1097
      %v1178 = vmul.f32 %v1098, %v1098
      %v1179 = vmul.f32 %v1099, %v1099
      %v1180 = vmul.f32 %v1100, %v1100
      %v1181 = vmul.f32 %v1101, %v1101
      %v1182 = vmul.f32 %v1102, %v1102
      %v1183 = vmul.f32 %v1103, %v1103
      %v1184 = vmul.f32 %v1104, %v1104
      %v1185 = vmul.f32 %v1105, %v1105
      %v1186 = vsub.f32 %v1154, %v1170
      %v1187 = vsub.f32 %v1155, %v1171
      %v1188 = vsub.f32 %v1156, %v1172
      %v1189 = vsub.f32 %v1157, %v1173
      %v1190 = vsub.f32 %v1158, %v1174
      %v1191 = vsub.f32 %v1159, %v1175
      %v1192 = vsub.f32 %v1160, %v1176
      %v1193 = vsub.f32 %v1161, %v1177
      %v1194 = vsub.f32 %v1162, %v1178
      %v1195 = vsub.f32 %v1163, %v1179
      %v1196 = vsub.f32 %v1164, %v1180
      %v1197 = vsub.f32 %v1165, %v1181
      %v1198 = vsub.f32 %v1166, %v1182
      %v1199 = vsub.f32 %v1167, %v1183
      %v1200 = vsub.f32 %v1168, %v1184
      %v1201 = vsub.f32 %v1169, %v1185
      %v1202 = vsub.f32 %v996, %v1090
      %v1203 = vsub.f32 %v999, %v1091
      %v1204 = vsub.f32 %v1004, %v1092
      %v1205 = vsub.f32 %v1007, %v1093
      %v1206 = vsub.f32 %v1012, %v1094
      %v1207 = vsub.f32 %v1015, %v1095
      %v1208 = vsub.f32 %v1020, %v1096
      %v1209 = vsub.f32 %v1023, %v1097
      %v1210 = vsub.f32 %v1028, %v1098
      %v1211 = vsub.f32 %v1031, %v1099
      %v1212 = vsub.f32 %v1036, %v1100
      %v1213 = vsub.f32 %v1039, %v1101
      %v1214 = vsub.f32 %v1044, %v1102
      %v1215 = vsub.f32 %v1047, %v1103
      %v1216 = vsub.f32 %v1052, %v1104
      %v1217 = vsub.f32 %v1055, %v1105
      %v1218 = vadd.f32 %v1186, 1e-05
      %v1219 = vadd.f32 %v1187, 1e-05
      %v1220 = vadd.f32 %v1188, 1e-05
      %v1221 = vadd.f32 %v1189, 1e-05
      %v1222 = vadd.f32 %v1190, 1e-05
      %v1223 = vadd.f32 %v1191, 1e-05
      %v1224 = vadd.f32 %v1192, 1e-05
      %v1225 = vadd.f32 %v1193, 1e-05
      %v1226 = vadd.f32 %v1194, 1e-05
      %v1227 = vadd.f32 %v1195, 1e-05
      %v1228 = vadd.f32 %v1196, 1e-05
      %v1229 = vadd.f32 %v1197, 1e-05
      %v1230 = vadd.f32 %v1198, 1e-05
      %v1231 = vadd.f32 %v1199, 1e-05
      %v1232 = vadd.f32 %v1200, 1e-05
      %v1233 = vadd.f32 %v1201, 1e-05
      %v1234 = vrsqrt.pop %v1218
      %v1235 = vrsqrt.pop %v1219
      %v1236 = vrsqrt.pop %v1220
      %v1237 = vrsqrt.pop %v1221
      %v1238 = vrsqrt.pop %v1222
      %v1239 = vrsqrt.pop %v1223
      %v1240 = vrsqrt.pop %v1224
      %v1241 = vrsqrt.pop %v1225
      %v1242 = vrsqrt.pop %v1226
      %v1243 = vrsqrt.pop %v1227
      %v1244 = vrsqrt.pop %v1228
      %v1245 = vrsqrt.pop %v1229
      %v1246 = vrsqrt.pop %v1230
      %v1247 = vrsqrt.pop %v1231
      %v1248 = vrsqrt.pop %v1232
      %v1249 = vrsqrt.pop %v1233
      %v1250 = vmul.f32 %v1202, %v1234
      %v1251 = vmul.f32 %v1203, %v1235
      %v1252 = vmul.f32 %v1204, %v1236
      %v1253 = vmul.f32 %v1205, %v1237
      %v1254 = vmul.f32 %v1206, %v1238
      %v1255 = vmul.f32 %v1207, %v1239
      %v1256 = vmul.f32 %v1208, %v1240
      %v1257 = vmul.f32 %v1209, %v1241
      %v1258 = vmul.f32 %v1210, %v1242
      %v1259 = vmul.f32 %v1211, %v1243
      %v1260 = vmul.f32 %v1212, %v1244
      %v1261 = vmul.f32 %v1213, %v1245
      %v1262 = vmul.f32 %v1214, %v1246
      %v1263 = vmul.f32 %v1215, %v1247
      %v1264 = vmul.f32 %v1216, %v1248
      %v1265 = vmul.f32 %v1217, %v1249
      %v1266 = vlaneseq
      %v1267 = vshrl.u32 %v1266, 7
      %v1268 = vsub.s32 1, %v1267
      %v1269 = vrot.slane %v612, %v1268
      %v1270 = vmul.f32 %v1250, %v1269
      %v1271 = vmul.f32 %v1251, %v1269
      %v1272 = vmul.f32 %v1252, %v1269
      %v1273 = vmul.f32 %v1253, %v1269
      %v1274 = vmul.f32 %v1254, %v1269
      %v1275 = vmul.f32 %v1255, %v1269
      %v1276 = vmul.f32 %v1256, %v1269
      %v1277 = vmul.f32 %v1257, %v1269
      %v1278 = vmul.f32 %v1258, %v1269
      %v1279 = vmul.f32 %v1259, %v1269
      %v1280 = vmul.f32 %v1260, %v1269
      %v1281 = vmul.f32 %v1261, %v1269
      %v1282 = vmul.f32 %v1262, %v1269
      %v1283 = vmul.f32 %v1263, %v1269
      %v1284 = vmul.f32 %v1264, %v1269
      %v1285 = vmul.f32 %v1265, %v1269
      %v1286 = vlaneseq
      %v1287 = vshrl.u32 %v1286, 7
      %v1288 = vsub.s32 2, %v1287
      %v1289 = vrot.slane %v612, %v1288
      %v1290 = vadd.f32 %v1270, %v1289
      %v1291 = vadd.f32 %v1271, %v1289
      %v1292 = vadd.f32 %v1272, %v1289
      %v1293 = vadd.f32 %v1273, %v1289
      %v1294 = vadd.f32 %v1274, %v1289
      %v1295 = vadd.f32 %v1275, %v1289
      %v1296 = vadd.f32 %v1276, %v1289
      %v1297 = vadd.f32 %v1277, %v1289
      %v1298 = vadd.f32 %v1278, %v1289
      %v1299 = vadd.f32 %v1279, %v1289
      %v1300 = vadd.f32 %v1280, %v1289
      %v1301 = vadd.f32 %v1281, %v1289
      %v1302 = vadd.f32 %v1282, %v1289
      %v1303 = vadd.f32 %v1283, %v1289
      %v1304 = vadd.f32 %v1284, %v1289
      %v1305 = vadd.f32 %v1285, %v1289
      %v1306 = vmax.f32 %v1290, 0.0
      %v1307 = vmax.f32 %v1291, 0.0
      %v1308 = vmax.f32 %v1292, 0.0
      %v1309 = vmax.f32 %v1293, 0.0
      %v1310 = vmax.f32 %v1294, 0.0
      %v1311 = vmax.f32 %v1295, 0.0
      %v1312 = vmax.f32 %v1296, 0.0
      %v1313 = vmax.f32 %v1297, 0.0
      %v1314 = vmax.f32 %v1298, 0.0
      %v1315 = vmax.f32 %v1299, 0.0
      %v1316 = vmax.f32 %v1300, 0.0
      %v1317 = vmax.f32 %v1301, 0.0
      %v1318 = vmax.f32 %v1302, 0.0
      %v1319 = vmax.f32 %v1303, 0.0
      %v1320 = vmax.f32 %v1304, 0.0
      %v1321 = vmax.f32 %v1305, 0.0
      %1322 = vst [vmem:[#allocation2] sm:$0xff] %v1306
      %1323 = vst [vmem:[#allocation2 + $0x8] sm:$0xff] %v1307
      %1324 = vst [vmem:[#allocation2 + $0x10] sm:$0xff] %v1308
      %1325 = vst [vmem:[#allocation2 + $0x18] sm:$0xff] %v1309
      %1326 = vst [vmem:[#allocation2 + $0x20] sm:$0xff] %v1310
      %1327 = vst [vmem:[#allocation2 + $0x28] sm:$0xff] %v1311
      %1328 = vst [vmem:[#allocation2 + $0x30] sm:$0xff] %v1312
      %1329 = vst [vmem:[#allocation2 + $0x38] sm:$0xff] %v1313
      %1330 = vst [vmem:[#allocation2 + $0x40] sm:$0xff] %v1314
      %1331 = vst [vmem:[#allocation2 + $0x48] sm:$0xff] %v1315
      %1332 = vst [vmem:[#allocation2 + $0x50] sm:$0xff] %v1316
      %1333 = vst [vmem:[#allocation2 + $0x58] sm:$0xff] %v1317
      %1334 = vst [vmem:[#allocation2 + $0x60] sm:$0xff] %v1318
      %1335 = vst [vmem:[#allocation2 + $0x68] sm:$0xff] %v1319
      %1336 = vst [vmem:[#allocation2 + $0x70] sm:$0xff] %v1320
      %1337 = vst [vmem:[#allocation2 + $0x78] sm:$0xff] %v1321
      %p1338 = scmp.eq.s32.totalorder %s17, 1
      // Predicated region
      $region169: #{graph_conv_network_forward.1} parent=27 // pred_check
        %p1339 = pneg %p1338
      $region170: #{graph_conv_network_forward.1} parent=27 // pred_check_branch
        %1341 = sbr.rel (%p1339) target = $region172
      $region171: #{graph_conv_network_forward.1} parent=27 // pred_region
        %s1342 = scalar_lea.sflag [#allocation7], 2
        %s1343 = smul.u32 4, 2
        %s1344 = smul.u32 %s1343, 1
        %s1345 = sshll.u32 %s1344, 4
        %1346 = dma.done %s1342, %s1345
        %s1347 = scalar_lea.sflag [#allocation7], 3
        %s1348 = smul.u32 4, 16
        %s1349 = smul.u32 %s1348, 1
        %s1350 = sshll.u32 %s1349, 4
        %1351 = dma.done %s1347, %s1350
        %v1352 = vld [vmem:[#allocation5] sm:$0xf]
        %v1353 = vld [vmem:[#allocation5 + $0x4] sm:$0xf]
        %v1354 = vld [vmem:[#allocation2] sm:$0xff]
        %v1355 = vld [vmem:[#allocation2 + $0x8] sm:$0xff]
        %v1356 = vld [vmem:[#allocation2 + $0x10] sm:$0xff]
        %v1357 = vld [vmem:[#allocation2 + $0x18] sm:$0xff]
        %v1358 = vld [vmem:[#allocation2 + $0x20] sm:$0xff]
        %v1359 = vld [vmem:[#allocation2 + $0x28] sm:$0xff]
        %v1360 = vld [vmem:[#allocation2 + $0x30] sm:$0xff]
        %v1361 = vld [vmem:[#allocation2 + $0x38] sm:$0xff]
        %v1362 = vld [vmem:[#allocation2 + $0x40] sm:$0xff]
        %v1363 = vld [vmem:[#allocation2 + $0x48] sm:$0xff]
        %v1364 = vld [vmem:[#allocation2 + $0x50] sm:$0xff]
        %v1365 = vld [vmem:[#allocation2 + $0x58] sm:$0xff]
        %v1366 = vld [vmem:[#allocation2 + $0x60] sm:$0xff]
        %v1367 = vld [vmem:[#allocation2 + $0x68] sm:$0xff]
        %v1368 = vld [vmem:[#allocation2 + $0x70] sm:$0xff]
        %v1369 = vld [vmem:[#allocation2 + $0x78] sm:$0xff]
        %v1370 = vpack.c.bf16 %v1355, %v1354
        %v1371 = vpack.c.bf16 %v1357, %v1356
        %v1372 = vpack.c.bf16 %v1359, %v1358
        %v1373 = vpack.c.bf16 %v1361, %v1360
        %v1374 = vpack.c.bf16 %v1363, %v1362
        %v1375 = vpack.c.bf16 %v1365, %v1364
        %v1376 = vpack.c.bf16 %v1367, %v1366
        %v1377 = vpack.c.bf16 %v1369, %v1368
        %v1380 = vunpack.c.l.b16 %v1352
        %v1381 = vunpack.c.l.b16 %v1353
        %v1382 = vpack.c.b16 %v1381, %v1380
        %1384 = vmatprep.subr.bf16.mxu0 0
        %1385 = vmatpush1.bf16.msra.mxu0 %v1377
        %1386 = vmatprep.subr.bf16.mxu0 0
        %1387 = vmatpush1.bf16.msra.mxu0 %v1376
        %1388 = vmatprep.subr.bf16.mxu0 0
        %1389 = vmatpush1.bf16.msra.mxu0 %v1375
        %1390 = vmatprep.subr.bf16.mxu0 0
        %1391 = vmatpush1.bf16.msra.mxu0 %v1374
        %1392 = vmatprep.subr.bf16.mxu0 0
        %1393 = vmatpush1.bf16.msra.mxu0 %v1373
        %1394 = vmatprep.subr.bf16.mxu0 0
        %1395 = vmatpush1.bf16.msra.mxu0 %v1372
        %1396 = vmatprep.subr.bf16.mxu0 0
        %1397 = vmatpush1.bf16.msra.mxu0 %v1371
        %1398 = vmatprep.subr.bf16.mxu0 0
        %1399 = vmatpush1.bf16.msra.mxu0 %v1370
        %1400 = vmatprep.subr.bf16.mxu0 0
        %1401 = vmatpush2.bf16.msra.mxu0 0
        %1402 = vmatprep.subr.bf16.mxu0 0
        %1403 = vmatpush2.bf16.msra.mxu0 0
        %1404 = vmatprep.subr.bf16.mxu0 0
        %1405 = vmatpush2.bf16.msra.mxu0 0
        %1406 = vmatprep.subr.bf16.mxu0 0
        %1407 = vmatpush2.bf16.msra.mxu0 0
        %1408 = vmatprep.subr.bf16.mxu0 0
        %1409 = vmatpush2.bf16.msra.mxu0 0
        %1410 = vmatprep.subr.bf16.mxu0 0
        %1411 = vmatpush2.bf16.msra.mxu0 0
        %1412 = vmatprep.subr.bf16.mxu0 0
        %1413 = vmatpush2.bf16.msra.mxu0 0
        %1414 = vmatprep.subr.bf16.mxu0 0
        %1415 = vmatpush2.bf16.msra.mxu0 0
        %1416 = vmatprep.mubr.bf16.mxu0 0
        %1417 = vmatmul.mubr.bf16.gmra.mxu0 %v1382
        %v1418 = vpop.f32.mrf.mxu0
        %v1419 = vadd.f32 0.0, %v1418
        %v1420 = vpop.f32.mrf.mxu0
        %v1421 = vpop.f32.mrf.mxu0
        %v1422 = vadd.f32 0.0, %v1421
        %v1423 = vpop.f32.mrf.mxu0
        %1424 = vdwg.mxu0
        %v1425 = vpack.c.bf16 %v1422, %v1419
        %v1426 = vld [vmem:[#allocation6] sm:$0xf]
        %v1427 = vld [vmem:[#allocation6 + $0x4] sm:$0xf]
        %v1428 = vld [vmem:[#allocation6 + $0x8] sm:$0xf]
        %v1429 = vld [vmem:[#allocation6 + $0xc] sm:$0xf]
        %v1430 = vld [vmem:[#allocation6 + $0x10] sm:$0xf]
        %v1431 = vld [vmem:[#allocation6 + $0x14] sm:$0xf]
        %v1432 = vld [vmem:[#allocation6 + $0x18] sm:$0xf]
        %v1433 = vld [vmem:[#allocation6 + $0x1c] sm:$0xf]
        %v1434 = vld [vmem:[#allocation6 + $0x20] sm:$0xf]
        %v1435 = vld [vmem:[#allocation6 + $0x24] sm:$0xf]
        %v1436 = vld [vmem:[#allocation6 + $0x28] sm:$0xf]
        %v1437 = vld [vmem:[#allocation6 + $0x2c] sm:$0xf]
        %v1438 = vld [vmem:[#allocation6 + $0x30] sm:$0xf]
        %v1439 = vld [vmem:[#allocation6 + $0x34] sm:$0xf]
        %v1440 = vld [vmem:[#allocation6 + $0x38] sm:$0xf]
        %v1441 = vld [vmem:[#allocation6 + $0x3c] sm:$0xf]
        %v1458 = vunpack.c.l.b16 %v1426
        %v1459 = vunpack.c.l.b16 %v1427
        %v1460 = vunpack.c.l.b16 %v1428
        %v1461 = vunpack.c.l.b16 %v1429
        %v1462 = vunpack.c.l.b16 %v1430
        %v1463 = vunpack.c.l.b16 %v1431
        %v1464 = vunpack.c.l.b16 %v1432
        %v1465 = vunpack.c.l.b16 %v1433
        %v1466 = vunpack.c.l.b16 %v1434
        %v1467 = vunpack.c.l.b16 %v1435
        %v1468 = vunpack.c.l.b16 %v1436
        %v1469 = vunpack.c.l.b16 %v1437
        %v1470 = vunpack.c.l.b16 %v1438
        %v1471 = vunpack.c.l.b16 %v1439
        %v1472 = vunpack.c.l.b16 %v1440
        %v1473 = vunpack.c.l.b16 %v1441
        %v1474 = vpack.c.b16 %v1459, %v1458
        %v1475 = vpack.c.b16 %v1461, %v1460
        %v1476 = vpack.c.b16 %v1463, %v1462
        %v1477 = vpack.c.b16 %v1465, %v1464
        %v1478 = vpack.c.b16 %v1467, %v1466
        %v1479 = vpack.c.b16 %v1469, %v1468
        %v1480 = vpack.c.b16 %v1471, %v1470
        %v1481 = vpack.c.b16 %v1473, %v1472
        %1490 = vmatprep.subr.bf16.mxu0 0
        %1491 = vmatpush1.bf16.msra.mxu0 %v1481
        %1492 = vmatprep.subr.bf16.mxu0 0
        %1493 = vmatpush1.bf16.msra.mxu0 %v1480
        %1494 = vmatprep.subr.bf16.mxu0 0
        %1495 = vmatpush1.bf16.msra.mxu0 %v1479
        %1496 = vmatprep.subr.bf16.mxu0 0
        %1497 = vmatpush1.bf16.msra.mxu0 %v1478
        %1498 = vmatprep.subr.bf16.mxu0 0
        %1499 = vmatpush1.bf16.msra.mxu0 %v1477
        %1500 = vmatprep.subr.bf16.mxu0 0
        %1501 = vmatpush1.bf16.msra.mxu0 %v1476
        %1502 = vmatprep.subr.bf16.mxu0 0
        %1503 = vmatpush1.bf16.msra.mxu0 %v1475
        %1504 = vmatprep.subr.bf16.mxu0 0
        %1505 = vmatpush1.bf16.msra.mxu0 %v1474
        %1506 = vmatprep.subr.bf16.mxu0 0
        %1507 = vmatpush2.bf16.msra.mxu0 0
        %1508 = vmatprep.subr.bf16.mxu0 0
        %1509 = vmatpush2.bf16.msra.mxu0 0
        %1510 = vmatprep.subr.bf16.mxu0 0
        %1511 = vmatpush2.bf16.msra.mxu0 0
        %1512 = vmatprep.subr.bf16.mxu0 0
        %1513 = vmatpush2.bf16.msra.mxu0 0
        %1514 = vmatprep.subr.bf16.mxu0 0
        %1515 = vmatpush2.bf16.msra.mxu0 0
        %1516 = vmatprep.subr.bf16.mxu0 0
        %1517 = vmatpush2.bf16.msra.mxu0 0
        %1518 = vmatprep.subr.bf16.mxu0 0
        %1519 = vmatpush2.bf16.msra.mxu0 0
        %1520 = vmatprep.subr.bf16.mxu0 0
        %1521 = vmatpush2.bf16.msra.mxu0 0
        %1522 = vmatprep.mubr.bf16.mxu0 0
        %1523 = vmatmul.mubr.bf16.gmra.mxu0 %v1425
        %v1524 = vpop.f32.mrf.mxu0
        %v1525 = vadd.f32 0.0, %v1524
        %v1526 = vpop.f32.mrf.mxu0
        %v1527 = vpop.f32.mrf.mxu0
        %v1528 = vadd.f32 0.0, %v1527
        %v1529 = vpop.f32.mrf.mxu0
        %1530 = vdwg.mxu0
        %1531 = vst [vmem:[%s6] sm:$0xff] %v1525
        %1532 = vst [vmem:[%s6 + $0x8] sm:$0xff] %v1528
      $region172: #{graph_conv_network_forward.1} parent=27 // pred_fallthru
        _
      // Predicated region
      $region173: #{graph_conv_network_forward.1} parent=27 // pred_check
        %p1533 = pneg %p82
      $region174: #{graph_conv_network_forward.1} parent=27 // pred_check_branch
        %1535 = sbr.rel (%p1533) target = $region176
      $region175: #{graph_conv_network_forward.1} parent=27 // pred_region
        _
      $region176: #{graph_conv_network_forward.1} parent=27 // pred_fallthru
        _
      // Predicated region
      $region177: #{graph_conv_network_forward.1} parent=27 // pred_check
        %p1536 = pneg %p82
      $region178: #{graph_conv_network_forward.1} parent=27 // pred_check_branch
        %1538 = sbr.rel (%p1536) target = $region180
      $region179: #{graph_conv_network_forward.1} parent=27 // pred_region
        _
      $region180: #{graph_conv_network_forward.1} parent=27 // pred_fallthru
        _
    $region28: #{graph_conv_network_forward.1} parent=5 // pred_fallthru
      _
    %p1539 = scmp.le.s32.totalorder 2, %s12
    // Predicated region
    $region181: #{graph_conv_network_forward.1} parent=5 // pred_check
      %p1540 = pneg %p1539
    $region182: #{graph_conv_network_forward.1} parent=5 // pred_check_branch
      %1542 = sbr.rel (%p1540) target = $region184
    $region183: #{graph_conv_network_forward.1} parent=5 // pred_region
      %s1543 = ssub.s32 %s12, 2
    $region184: #{graph_conv_network_forward.1} parent=5 // pred_fallthru
      _
  $region6: #{graph_conv_network_forward.1} parent=0 // loop_footer
    %s16 = sadd.s32 1, %s12
  $region7: #{graph_conv_network_forward.1} parent=0 // loop_footer_branch
    %11 = sbr.rel target = $region3
  $region8: #{graph_conv_network_forward.1} parent=0 // loop_exit
    _
  %1544 = vsyncmov [#allocation7]
  %s1545 = vpop.sfrf %1544
  %p1546 = scmp.eq.s32.totalorder %s1545, 0
  %p1547 = pneg %p1546
  %1549 = shalt.err (%p1547)
  %s1550 = scalar_lea.sflag [#allocation7], 1
  %1551 = vsyncmov %s1550
  %s1552 = vpop.sfrf %1551
  %p1553 = scmp.eq.s32.totalorder %s1552, 0
  %p1554 = pneg %p1553
  %1556 = shalt.err (%p1554)
  %s1557 = scalar_lea.sflag [#allocation7], 2
  %1558 = vsyncmov %s1557
  %s1559 = vpop.sfrf %1558
  %p1560 = scmp.eq.s32.totalorder %s1559, 0
  %p1561 = pneg %p1560
  %1563 = shalt.err (%p1561)
  %s1564 = scalar_lea.sflag [#allocation7], 3
  %1565 = vsyncmov %s1564
  %s1566 = vpop.sfrf %1565
  %p1567 = scmp.eq.s32.totalorder %s1566, 0
  %p1568 = pneg %p1567
  %1570 = shalt.err (%p1568)

</llo_original>
